<compile_context>
chip_gen: v7x
topology: tpu7x:2x2x1
jax: 0.10.0
libtpu: 0.0.40
codegen_flags: <defaults>
</compile_context>

<pallas_src>
import functools
import math

import jax
import jax.numpy as jnp
from jax.experimental import pallas as pl
from jax.experimental.pallas import tpu as pltpu


MATMUL_DTYPE = jnp.bfloat16   # set to jnp.float32 for exact-f32 matmuls


# ---------------------------------------------------------------------------
# helpers
# ---------------------------------------------------------------------------
def _layernorm(x, gamma, beta, eps=1e-5):
    # PyTorch LayerNorm: biased variance over last dim, eps=1e-5.  f32 math.
    mu = jnp.mean(x, axis=-1, keepdims=True)
    var = jnp.mean((x - mu) ** 2, axis=-1, keepdims=True)
    return (x - mu) * jax.lax.rsqrt(var + eps) * gamma + beta


def _layer_spec(stacked_shape):
    # stacked (L, ...) parameter: pick layer `l`, squeeze the leading layer dim.
    tail = tuple(stacked_shape[1:])
    n = len(tail)
    return pl.BlockSpec((None,) + tail, lambda c, l, _n=n: (l,) + (0,) * _n)


def _default_core_splits(batch, seq):
    # Leading "parallel" axis: lets v7x megacore split the batch across its
    # 2 TensorCores.  Harmless (pure sequential loop) on v5e/v6e.
    if batch % 2 == 0 and ((batch // 2) * seq) % 8 == 0:
        return 2
    return 1


def _vmem_limit_bytes():
    cap = 128 * 1024 * 1024
    try:
        info = pltpu.get_tpu_info()
        cap = int(getattr(info, "vmem_capacity_bytes", cap) or cap)
    except Exception:
        pass
    # ~48 MiB on 64 MiB parts (v7x), ~96-100 MiB on 128 MiB parts (v5e/v6e).
    return int(min(cap * 3 // 4, 100 * 1024 * 1024))


# ---------------------------------------------------------------------------
# encoder-stack kernel: grid = (core_split, layer)
# ---------------------------------------------------------------------------
def _encoder_layers_kernel(
    x0_hbm,                                    # (B*S, D) f32, HBM (pl.ANY)
    wqkv_ref, bqkv_ref, wo_ref, bo_ref,
    ln1w_ref, ln1b_ref,
    w1_ref, b1_ref, w2_ref, b2_ref,
    ln2w_ref, ln2b_ref,
    out_ref,                                   # (B_local*S, D) f32, resident
    *, n_head, seq_len, batch_local, d_model,
):
    c = pl.program_id(0)                       # batch split (parallel)
    l = pl.program_id(1)                       # layer (arbitrary / sequential)
    S, BL, D, H = seq_len, batch_local, d_model, n_head
    dh = D // H
    rows = BL * S
    cdt = wqkv_ref.dtype                       # matmul operand dtype (bf16)

    # ---- layer 0: DMA emb*sqrt(d)+PE slice from HBM into the resident block ----
    @pl.when(l == 0)
    def _load_x0():
        start = pl.multiple_of(c * rows, rows)
        pltpu.sync_copy(x0_hbm.at[pl.ds(start, rows), :], out_ref)

    x = out_ref[...]                           # (rows, D) f32
    xc = x.astype(cdt)

    # ---- fused QKV projection: one MXU-dense GEMM (q-scale folded in weight) ----
    qkv = jnp.dot(xc, wqkv_ref[...],
                  preferred_element_type=jnp.float32) + bqkv_ref[...]   # (rows, 3D)

    # causal mask built in-kernel (no (S,S) HBM tensor, no mask add)
    row_ids = jax.lax.broadcasted_iota(jnp.int32, (S, S), 0)
    col_ids = jax.lax.broadcasted_iota(jnp.int32, (S, S), 1)
    causal = (col_ids <= row_ids)[None, :, :]                           # (1,S,S)

    # ---- per-head attention (batched over B on the leading axis) ----
    ctx_parts = []
    for h in range(H):
        qh = qkv[:, h * dh:(h + 1) * dh].reshape(BL, S, dh)
        kh = qkv[:, D + h * dh:D + (h + 1) * dh].reshape(BL, S, dh)
        vh = qkv[:, 2 * D + h * dh:2 * D + (h + 1) * dh].reshape(BL, S, dh)

        s = jnp.einsum("bqd,bkd->bqk", qh.astype(cdt), kh.astype(cdt),
                       preferred_element_type=jnp.float32)              # (BL,S,S)
        s = jnp.where(causal, s, -1e30)
        s = s - jnp.max(s, axis=-1, keepdims=True)
        p = jnp.exp(s)                                                  # f32
        p = p * pl.reciprocal(jnp.sum(p, axis=-1, keepdims=True), approx=True)

        ctx_h = jnp.einsum("bqk,bkd->bqd", p.astype(cdt), vh.astype(cdt),
                           preferred_element_type=jnp.float32)          # (BL,S,dh)
        ctx_parts.append(ctx_h.reshape(rows, dh))

    ctx = jnp.concatenate(ctx_parts, axis=-1)                           # (rows, D)

    # ---- single dense output projection on concatenated heads ----
    attn = jnp.dot(ctx.astype(cdt), wo_ref[...],
                   preferred_element_type=jnp.float32) + bo_ref[...]

    # ---- residual + LayerNorm 1 (f32) ----
    y = _layernorm(x + attn, ln1w_ref[...], ln1b_ref[...])

    # ---- feed-forward (ReLU), f32 elementwise ----
    h1 = jnp.dot(y.astype(cdt), w1_ref[...],
                 preferred_element_type=jnp.float32) + b1_ref[...]
    h1 = jnp.maximum(h1, 0.0)
    h2 = jnp.dot(h1.astype(cdt), w2_ref[...],
                 preferred_element_type=jnp.float32) + b2_ref[...]

    # ---- residual + LayerNorm 2, write back into the resident block ----
    out_ref[...] = _layernorm(y + h2, ln2w_ref[...], ln2b_ref[...])


# ---------------------------------------------------------------------------
# decoder kernel: vocab-tiled, lane-dense output
# ---------------------------------------------------------------------------
def _decoder_kernel(act_ref, w_ref, b_ref, out_ref):
    out_ref[...] = (
        jnp.dot(act_ref[...].astype(w_ref.dtype), w_ref[...],
                preferred_element_type=jnp.float32) + b_ref[...]
    )


# ---------------------------------------------------------------------------
# model glue
# ---------------------------------------------------------------------------
def make_positional_encoding(S, d_model):
    position = jnp.arange(S, dtype=jnp.float32)[:, None]
    div_term = jnp.exp(
        jnp.arange(0, d_model, 2, dtype=jnp.float32)
        * (-math.log(10000.0) / d_model)
    )
    pe = jnp.zeros((S, d_model), jnp.float32)
    pe = pe.at[:, 0::2].set(jnp.sin(position * div_term))
    pe = pe.at[:, 1::2].set(jnp.cos(position * div_term))
    return pe[None, :, :]                                       # (1, S, d_model)


def init_params(key, n_token, d_model, n_head, n_hid, n_layers,
                matmul_dtype=MATMUL_DTYPE):
    assert d_model % n_head == 0
    dh = d_model // n_head
    v_pad = ((n_token + 127) // 128) * 128                      # lane-dense vocab
    s = 1.0 / math.sqrt(d_model)
    sh = 1.0 / math.sqrt(n_hid)
    k = jax.random.split(key, 8)

    def u(kk, shape, lo, hi):
        return jax.random.uniform(kk, shape, jnp.float32, lo, hi)

    L, D, F = n_layers, d_model, n_hid

    # fused QKV weight (D, 3D): columns ordered [q | k | v], heads contiguous.
    # The 1/sqrt(dh) query scale is folded into the q block at init.
    wq = u(k[2], (L, D, D), -s, s) * (1.0 / math.sqrt(dh))
    wk = u(k[3], (L, D, D), -s, s)
    wv = u(k[4], (L, D, D), -s, s)
    wqkv = jnp.concatenate([wq, wk, wv], axis=-1)               # (L, D, 3D)

    # decoder weight padded with zero columns up to v_pad (sliced off in wrapper)
    dec_w = jnp.zeros((d_model, v_pad), jnp.float32)
    dec_w = dec_w.at[:, :n_token].set(u(k[1], (d_model, n_token), -0.1, 0.1))

    params = dict(
        emb=u(k[0], (n_token, d_model), -0.1, 0.1),
        wqkv=wqkv.astype(matmul_dtype),
        bqkv=jnp.zeros((L, 1, 3 * D), jnp.float32),
        wo=u(k[5], (L, D, D), -s, s).astype(matmul_dtype),
        bo=jnp.zeros((L, 1, D), jnp.float32),
        ln1w=jnp.ones((L, 1, D), jnp.float32),
        ln1b=jnp.zeros((L, 1, D), jnp.float32),
        w1=u(k[6], (L, D, F), -s, s).astype(matmul_dtype),
        b1=jnp.zeros((L, 1, F), jnp.float32),
        w2=u(k[7], (L, F, D), -sh, sh).astype(matmul_dtype),
        b2=jnp.zeros((L, 1, D), jnp.float32),
        ln2w=jnp.ones((L, 1, D), jnp.float32),
        ln2b=jnp.zeros((L, 1, D), jnp.float32),
        dec_w=dec_w.astype(matmul_dtype),
        dec_b=jnp.zeros((1, v_pad), jnp.float32),
    )
    return params


def transformer_forward(params, src, *, n_token, n_head, d_model, core_splits=None):
    S, B = src.shape
    L = params["wqkv"].shape[0]
    v_pad = params["dec_w"].shape[1]
    vmem_limit = _vmem_limit_bytes()

    # embedding gather + scale + PE (plain-JAX glue), batch-major (B*S, D)
    emb = jnp.take(params["emb"], src, axis=0)                  # (S, B, D)
    emb = jnp.transpose(emb, (1, 0, 2)).astype(jnp.float32)     # (B, S, D)
    pe = make_positional_encoding(S, d_model)                   # (1, S, D)
    x0 = (emb * math.sqrt(d_model) + pe).reshape(B * S, d_model)

    P = core_splits if core_splits is not None else _default_core_splits(B, S)
    BL = B // P

    layer_params = (
        params["wqkv"], params["bqkv"], params["wo"], params["bo"],
        params["ln1w"], params["ln1b"], params["w1"], params["b1"],
        params["w2"], params["b2"], params["ln2w"], params["ln2b"],
    )

    kernel = functools.partial(
        _encoder_layers_kernel, n_head=n_head, seq_len=S,
        batch_local=BL, d_model=d_model)

    in_specs = [pl.BlockSpec(memory_space=pl.ANY)]              # x0 stays in HBM
    in_specs += [_layer_spec(p.shape) for p in layer_params]

    grid_spec = pltpu.PrefetchScalarGridSpec(
        num_scalar_prefetch=0,
        grid=(P, L),                                            # (core split, layer)
        in_specs=in_specs,
        out_specs=pl.BlockSpec((BL * S, d_model), lambda c, l: (c, 0)),
    )

    act = pl.pallas_call(
        kernel,
        out_shape=jax.ShapeDtypeStruct((B * S, d_model), jnp.float32),
        grid_spec=grid_spec,
        compiler_params=pltpu.CompilerParams(
            dimension_semantics=("parallel", "arbitrary"),
            vmem_limit_bytes=vmem_limit),
    )(x0, *layer_params)

    # ---- decoder projection: separate kernel, vocab-tiled parallel grid ----
    tn = 128
    for cand in (512, 256):
        if v_pad % cand == 0:
            tn = cand
            break

    logits_flat = pl.pallas_call(
        _decoder_kernel,
        out_shape=jax.ShapeDtypeStruct((B * S, v_pad), jnp.float32),
        grid_spec=pltpu.PrefetchScalarGridSpec(
            num_scalar_prefetch=0,
            grid=(v_pad // tn,),
            in_specs=[pl.BlockSpec((B * S, d_model), lambda j: (0, 0)),
                      pl.BlockSpec((d_model, tn), lambda j: (0, j)),
                      pl.BlockSpec((1, tn), lambda j: (0, j))],
            out_specs=pl.BlockSpec((B * S, tn), lambda j: (0, j)),
        ),
        compiler_params=pltpu.CompilerParams(
            dimension_semantics=("parallel",),
            vmem_limit_bytes=vmem_limit),
    )(act, params["dec_w"], params["dec_b"])

    logits = logits_flat.reshape(B, S, v_pad)[:, :, :n_token]   # drop vocab padding
    return jnp.transpose(logits, (1, 0, 2))                     # (S, B, n_token)


# ---------------------------------------------------------------------------
if __name__ == "__main__":
    n_token, n_inp, n_head, n_hid, n_layers = 50, 32, 4, 64, 2
    S, B = 8, 2

    key = jax.random.PRNGKey(0)
    params = init_params(key, n_token, n_inp, n_head, n_hid, n_layers)

    src = jax.random.randint(jax.random.fold_in(key, 123), (S, B), 0, n_token,
                             dtype=jnp.int32)

    out = transformer_forward(params, src, n_token=n_token,
                              n_head=n_head, d_model=n_inp)
    out = jax.block_until_ready(out)

    assert out.shape == (S, B, n_token), out.shape
    assert bool(jnp.all(jnp.isfinite(out)))
    print("KERNEL_OK")
</pallas_src>

<mosaic_0001>
module attributes {stable_mosaic.version = 11 : i64} {
  func.func @_encoder_layers_kernel(%arg0: i32, %arg1: i32, %arg2: memref<16x32xf32, #tpu.memory_space<any>>, %arg3: memref<1x32x96xbf16, #tpu.memory_space<vmem>>, %arg4: memref<1x1x96xf32, #tpu.memory_space<vmem>>, %arg5: memref<1x32x32xbf16, #tpu.memory_space<vmem>>, %arg6: memref<1x1x32xf32, #tpu.memory_space<vmem>>, %arg7: memref<1x1x32xf32, #tpu.memory_space<vmem>>, %arg8: memref<1x1x32xf32, #tpu.memory_space<vmem>>, %arg9: memref<1x32x64xbf16, #tpu.memory_space<vmem>>, %arg10: memref<1x1x64xf32, #tpu.memory_space<vmem>>, %arg11: memref<1x64x32xbf16, #tpu.memory_space<vmem>>, %arg12: memref<1x1x32xf32, #tpu.memory_space<vmem>>, %arg13: memref<1x1x32xf32, #tpu.memory_space<vmem>>, %arg14: memref<1x1x32xf32, #tpu.memory_space<vmem>>, %arg15: memref<8x32xf32, #tpu.memory_space<vmem>>) attributes {dimension_semantics = [#tpu.dimension_semantics<parallel>, #tpu.dimension_semantics<arbitrary>], iteration_bounds = array<i64: 2, 2>, scalar_prefetch = 0 : i64, scratch_operands = 0 : i64, tpu.core_type = #tpu.core_type<tc>, window_params = [{}, {transform_indices = @transform_1, window_bounds = array<i64: 1, 32, 96>}, {transform_indices = @transform_2, window_bounds = array<i64: 1, 1, 96>}, {transform_indices = @transform_3, window_bounds = array<i64: 1, 32, 32>}, {transform_indices = @transform_4, window_bounds = array<i64: 1, 1, 32>}, {transform_indices = @transform_5, window_bounds = array<i64: 1, 1, 32>}, {transform_indices = @transform_6, window_bounds = array<i64: 1, 1, 32>}, {transform_indices = @transform_7, window_bounds = array<i64: 1, 32, 64>}, {transform_indices = @transform_8, window_bounds = array<i64: 1, 1, 64>}, {transform_indices = @transform_9, window_bounds = array<i64: 1, 64, 32>}, {transform_indices = @transform_10, window_bounds = array<i64: 1, 1, 32>}, {transform_indices = @transform_11, window_bounds = array<i64: 1, 1, 32>}, {transform_indices = @transform_12, window_bounds = array<i64: 1, 1, 32>}, {transform_indices = @transform_13, window_bounds = array<i64: 8, 32>}]} {
    %c0_i32 = arith.constant 0 : i32
    %0 = arith.cmpi eq, %arg1, %c0_i32 : i32
    %1 = arith.extui %0 : i1 to i32
    %c0_i32_0 = arith.constant 0 : i32
    %2 = arith.cmpi ne, %1, %c0_i32_0 : i32
    scf.if %2 {
      %c8_i32 = arith.constant 8 : i32
      %198 = arith.muli %arg0, %c8_i32 : i32
      %199 = tpu.assume_multiple %198, 8 : i32
      "tpu.region"() ({
        %200 = tpu.sem_alloc : memref<!tpu.dma_semaphore, #tpu.memory_space<semaphore_mem>>
        %c0_i32_74 = arith.constant 0 : i32
        %201 = tpu.memref_slice %arg2[%199, %c0_i32_74] : memref<16x32xf32, #tpu.memory_space<any>> -> memref<8x32xf32, #tpu.memory_space<any>>
        tpu.enqueue_dma source(%201 : memref<8x32xf32, #tpu.memory_space<any>>) target(%arg15 : memref<8x32xf32, #tpu.memory_space<vmem>>) target_semaphore(%200 : memref<!tpu.dma_semaphore, #tpu.memory_space<semaphore_mem>>)
        %c0_i32_75 = arith.constant 0 : i32
        %202 = tpu.memref_slice %arg2[%199, %c0_i32_75] : memref<16x32xf32, #tpu.memory_space<any>> -> memref<8x32xf32, #tpu.memory_space<any>>
        tpu.wait_dma2 semaphore(%200 : memref<!tpu.dma_semaphore, #tpu.memory_space<semaphore_mem>>) src(%202 : memref<8x32xf32, #tpu.memory_space<any>>) dst(%arg15 : memref<8x32xf32, #tpu.memory_space<vmem>>)
        tpu.yield
      }) : () -> ()
    } else {
    }
    %c0 = arith.constant 0 : index
    %c0_1 = arith.constant 0 : index
    %3 = vector.load %arg15[%c0, %c0_1] : memref<8x32xf32, #tpu.memory_space<vmem>>, vector<8x32xf32>
    %4 = arith.truncf %3 : vector<8x32xf32> to vector<8x32xbf16>
    %c0_2 = arith.constant 0 : index
    %c0_3 = arith.constant 0 : index
    %c0_4 = arith.constant 0 : index
    %5 = vector.load %arg3[%c0_2, %c0_3, %c0_4] : memref<1x32x96xbf16, #tpu.memory_space<vmem>>, vector<1x32x96xbf16>
    %6 = vector.shape_cast %5 : vector<1x32x96xbf16> to vector<32x96xbf16>
    %cst = arith.constant dense<0.000000e+00> : vector<8x96xf32>
    %7 = tpu.matmul %4, %6, %cst {dimension_numbers = #tpu.dot_dimension_numbers<[1], [0], [0], [1], [0, 0, 1, 1], [], []>} : vector<8x32xbf16>, vector<32x96xbf16>, vector<8x96xf32> -> vector<8x96xf32>
    %c0_5 = arith.constant 0 : index
    %c0_6 = arith.constant 0 : index
    %c0_7 = arith.constant 0 : index
    %8 = vector.load %arg4[%c0_5, %c0_6, %c0_7] : memref<1x1x96xf32, #tpu.memory_space<vmem>>, vector<1x1x96xf32>
    %9 = vector.shape_cast %8 : vector<1x1x96xf32> to vector<1x96xf32>
    %10 = vector.broadcast %9 : vector<1x96xf32> to vector<8x96xf32>
    %11 = arith.addf %7, %10 : vector<8x96xf32>
    %12 = tpu.iota {dimensions = array<i32: 0>} : vector<8x8xi32>
    %13 = tpu.iota {dimensions = array<i32: 1>} : vector<8x8xi32>
    %14 = arith.cmpi sle, %13, %12 : vector<8x8xi32>
    %15 = vector.shape_cast %14 : vector<8x8xi1> to vector<1x8x8xi1>
    %16 = vector.extract_strided_slice %11 {offsets = [0, 0], sizes = [8, 8], strides = [1, 1]} : vector<8x96xf32> to vector<8x8xf32>
    %17 = vector.shape_cast %16 : vector<8x8xf32> to vector<1x8x8xf32>
    %18 = vector.extract_strided_slice %11 {offsets = [0, 32], sizes = [8, 8], strides = [1, 1]} : vector<8x96xf32> to vector<8x8xf32>
    %19 = vector.shape_cast %18 : vector<8x8xf32> to vector<1x8x8xf32>
    %20 = vector.extract_strided_slice %11 {offsets = [0, 64], sizes = [8, 8], strides = [1, 1]} : vector<8x96xf32> to vector<8x8xf32>
    %21 = vector.shape_cast %20 : vector<8x8xf32> to vector<1x8x8xf32>
    %22 = arith.truncf %17 : vector<1x8x8xf32> to vector<1x8x8xbf16>
    %23 = arith.truncf %19 : vector<1x8x8xf32> to vector<1x8x8xbf16>
    "tpu.trace_start"() <{level = 10 : i32, message = "bqd,bkd->bqk"}> : () -> ()
    %cst_8 = arith.constant dense<0.000000e+00> : vector<1x8x8xf32>
    %24 = tpu.matmul %22, %23, %cst_8 {dimension_numbers = #tpu.dot_dimension_numbers<[2], [2], [1], [1], [0, 0, 0, 1, 1, 1], [0], [0]>} : vector<1x8x8xbf16>, vector<1x8x8xbf16>, vector<1x8x8xf32> -> vector<1x8x8xf32>
    %cst_9 = arith.constant -1.000000e+30 : f32
    "tpu.trace_stop"() : () -> ()
    %25 = vector.broadcast %cst_9 : f32 to vector<1x8x8xf32>
    %26 = arith.select %15, %24, %25 : vector<1x8x8xi1>, vector<1x8x8xf32>
    %cst_10 = arith.constant dense<0xFF800000> : vector<1x8xf32>
    %27 = vector.multi_reduction <maximumf>, %26, %cst_10 [2] : vector<1x8x8xf32> to vector<1x8xf32>
    %28 = vector.shape_cast %27 : vector<1x8xf32> to vector<1x8x1xf32>
    %29 = vector.broadcast %28 : vector<1x8x1xf32> to vector<1x8x8xf32>
    %30 = arith.subf %26, %29 : vector<1x8x8xf32>
    %31 = math.exp %30 : vector<1x8x8xf32>
    %cst_11 = arith.constant dense<0.000000e+00> : vector<1x8xf32>
    %32 = vector.multi_reduction <add>, %31, %cst_11 [2] : vector<1x8x8xf32> to vector<1x8xf32>
    %33 = vector.shape_cast %32 : vector<1x8xf32> to vector<1x8x1xf32>
    %34 = tpu.reciprocal %33 {approx = true} : vector<1x8x1xf32> -> vector<1x8x1xf32>
    %35 = vector.broadcast %34 : vector<1x8x1xf32> to vector<1x8x8xf32>
    %36 = arith.mulf %31, %35 : vector<1x8x8xf32>
    %37 = arith.truncf %36 : vector<1x8x8xf32> to vector<1x8x8xbf16>
    %38 = arith.truncf %21 : vector<1x8x8xf32> to vector<1x8x8xbf16>
    "tpu.trace_start"() <{level = 10 : i32, message = "bqk,bkd->bqd"}> : () -> ()
    %cst_12 = arith.constant dense<0.000000e+00> : vector<1x8x8xf32>
    %39 = tpu.matmul %37, %38, %cst_12 {dimension_numbers = #tpu.dot_dimension_numbers<[2], [1], [1], [2], [0, 0, 0, 1, 1, 2], [0], [0]>} : vector<1x8x8xbf16>, vector<1x8x8xbf16>, vector<1x8x8xf32> -> vector<1x8x8xf32>
    "tpu.trace_stop"() : () -> ()
    %40 = vector.shape_cast %39 : vector<1x8x8xf32> to vector<8x8xf32>
    %41 = vector.extract_strided_slice %11 {offsets = [0, 8], sizes = [8, 8], strides = [1, 1]} : vector<8x96xf32> to vector<8x8xf32>
    %42 = vector.shape_cast %41 : vector<8x8xf32> to vector<1x8x8xf32>
    %43 = vector.extract_strided_slice %11 {offsets = [0, 40], sizes = [8, 8], strides = [1, 1]} : vector<8x96xf32> to vector<8x8xf32>
    %44 = vector.shape_cast %43 : vector<8x8xf32> to vector<1x8x8xf32>
    %45 = vector.extract_strided_slice %11 {offsets = [0, 72], sizes = [8, 8], strides = [1, 1]} : vector<8x96xf32> to vector<8x8xf32>
    %46 = vector.shape_cast %45 : vector<8x8xf32> to vector<1x8x8xf32>
    %47 = arith.truncf %42 : vector<1x8x8xf32> to vector<1x8x8xbf16>
    %48 = arith.truncf %44 : vector<1x8x8xf32> to vector<1x8x8xbf16>
    "tpu.trace_start"() <{level = 10 : i32, message = "bqd,bkd->bqk"}> : () -> ()
    %cst_13 = arith.constant dense<0.000000e+00> : vector<1x8x8xf32>
    %49 = tpu.matmul %47, %48, %cst_13 {dimension_numbers = #tpu.dot_dimension_numbers<[2], [2], [1], [1], [0, 0, 0, 1, 1, 1], [0], [0]>} : vector<1x8x8xbf16>, vector<1x8x8xbf16>, vector<1x8x8xf32> -> vector<1x8x8xf32>
    %cst_14 = arith.constant -1.000000e+30 : f32
    "tpu.trace_stop"() : () -> ()
    %50 = vector.broadcast %cst_14 : f32 to vector<1x8x8xf32>
    %51 = arith.select %15, %49, %50 : vector<1x8x8xi1>, vector<1x8x8xf32>
    %cst_15 = arith.constant dense<0xFF800000> : vector<1x8xf32>
    %52 = vector.multi_reduction <maximumf>, %51, %cst_15 [2] : vector<1x8x8xf32> to vector<1x8xf32>
    %53 = vector.shape_cast %52 : vector<1x8xf32> to vector<1x8x1xf32>
    %54 = vector.broadcast %53 : vector<1x8x1xf32> to vector<1x8x8xf32>
    %55 = arith.subf %51, %54 : vector<1x8x8xf32>
    %56 = math.exp %55 : vector<1x8x8xf32>
    %cst_16 = arith.constant dense<0.000000e+00> : vector<1x8xf32>
    %57 = vector.multi_reduction <add>, %56, %cst_16 [2] : vector<1x8x8xf32> to vector<1x8xf32>
    %58 = vector.shape_cast %57 : vector<1x8xf32> to vector<1x8x1xf32>
    %59 = tpu.reciprocal %58 {approx = true} : vector<1x8x1xf32> -> vector<1x8x1xf32>
    %60 = vector.broadcast %59 : vector<1x8x1xf32> to vector<1x8x8xf32>
    %61 = arith.mulf %56, %60 : vector<1x8x8xf32>
    %62 = arith.truncf %61 : vector<1x8x8xf32> to vector<1x8x8xbf16>
    %63 = arith.truncf %46 : vector<1x8x8xf32> to vector<1x8x8xbf16>
    "tpu.trace_start"() <{level = 10 : i32, message = "bqk,bkd->bqd"}> : () -> ()
    %cst_17 = arith.constant dense<0.000000e+00> : vector<1x8x8xf32>
    %64 = tpu.matmul %62, %63, %cst_17 {dimension_numbers = #tpu.dot_dimension_numbers<[2], [1], [1], [2], [0, 0, 0, 1, 1, 2], [0], [0]>} : vector<1x8x8xbf16>, vector<1x8x8xbf16>, vector<1x8x8xf32> -> vector<1x8x8xf32>
    "tpu.trace_stop"() : () -> ()
    %65 = vector.shape_cast %64 : vector<1x8x8xf32> to vector<8x8xf32>
    %66 = vector.extract_strided_slice %11 {offsets = [0, 16], sizes = [8, 8], strides = [1, 1]} : vector<8x96xf32> to vector<8x8xf32>
    %67 = vector.shape_cast %66 : vector<8x8xf32> to vector<1x8x8xf32>
    %68 = vector.extract_strided_slice %11 {offsets = [0, 48], sizes = [8, 8], strides = [1, 1]} : vector<8x96xf32> to vector<8x8xf32>
    %69 = vector.shape_cast %68 : vector<8x8xf32> to vector<1x8x8xf32>
    %70 = vector.extract_strided_slice %11 {offsets = [0, 80], sizes = [8, 8], strides = [1, 1]} : vector<8x96xf32> to vector<8x8xf32>
    %71 = vector.shape_cast %70 : vector<8x8xf32> to vector<1x8x8xf32>
    %72 = arith.truncf %67 : vector<1x8x8xf32> to vector<1x8x8xbf16>
    %73 = arith.truncf %69 : vector<1x8x8xf32> to vector<1x8x8xbf16>
    "tpu.trace_start"() <{level = 10 : i32, message = "bqd,bkd->bqk"}> : () -> ()
    %cst_18 = arith.constant dense<0.000000e+00> : vector<1x8x8xf32>
    %74 = tpu.matmul %72, %73, %cst_18 {dimension_numbers = #tpu.dot_dimension_numbers<[2], [2], [1], [1], [0, 0, 0, 1, 1, 1], [0], [0]>} : vector<1x8x8xbf16>, vector<1x8x8xbf16>, vector<1x8x8xf32> -> vector<1x8x8xf32>
    %cst_19 = arith.constant -1.000000e+30 : f32
    "tpu.trace_stop"() : () -> ()
    %75 = vector.broadcast %cst_19 : f32 to vector<1x8x8xf32>
    %76 = arith.select %15, %74, %75 : vector<1x8x8xi1>, vector<1x8x8xf32>
    %cst_20 = arith.constant dense<0xFF800000> : vector<1x8xf32>
    %77 = vector.multi_reduction <maximumf>, %76, %cst_20 [2] : vector<1x8x8xf32> to vector<1x8xf32>
    %78 = vector.shape_cast %77 : vector<1x8xf32> to vector<1x8x1xf32>
    %79 = vector.broadcast %78 : vector<1x8x1xf32> to vector<1x8x8xf32>
    %80 = arith.subf %76, %79 : vector<1x8x8xf32>
    %81 = math.exp %80 : vector<1x8x8xf32>
    %cst_21 = arith.constant dense<0.000000e+00> : vector<1x8xf32>
    %82 = vector.multi_reduction <add>, %81, %cst_21 [2] : vector<1x8x8xf32> to vector<1x8xf32>
    %83 = vector.shape_cast %82 : vector<1x8xf32> to vector<1x8x1xf32>
    %84 = tpu.reciprocal %83 {approx = true} : vector<1x8x1xf32> -> vector<1x8x1xf32>
    %85 = vector.broadcast %84 : vector<1x8x1xf32> to vector<1x8x8xf32>
    %86 = arith.mulf %81, %85 : vector<1x8x8xf32>
    %87 = arith.truncf %86 : vector<1x8x8xf32> to vector<1x8x8xbf16>
    %88 = arith.truncf %71 : vector<1x8x8xf32> to vector<1x8x8xbf16>
    "tpu.trace_start"() <{level = 10 : i32, message = "bqk,bkd->bqd"}> : () -> ()
    %cst_22 = arith.constant dense<0.000000e+00> : vector<1x8x8xf32>
    %89 = tpu.matmul %87, %88, %cst_22 {dimension_numbers = #tpu.dot_dimension_numbers<[2], [1], [1], [2], [0, 0, 0, 1, 1, 2], [0], [0]>} : vector<1x8x8xbf16>, vector<1x8x8xbf16>, vector<1x8x8xf32> -> vector<1x8x8xf32>
    "tpu.trace_stop"() : () -> ()
    %90 = vector.shape_cast %89 : vector<1x8x8xf32> to vector<8x8xf32>
    %91 = vector.extract_strided_slice %11 {offsets = [0, 24], sizes = [8, 8], strides = [1, 1]} : vector<8x96xf32> to vector<8x8xf32>
    %92 = vector.shape_cast %91 : vector<8x8xf32> to vector<1x8x8xf32>
    %93 = vector.extract_strided_slice %11 {offsets = [0, 56], sizes = [8, 8], strides = [1, 1]} : vector<8x96xf32> to vector<8x8xf32>
    %94 = vector.shape_cast %93 : vector<8x8xf32> to vector<1x8x8xf32>
    %95 = vector.extract_strided_slice %11 {offsets = [0, 88], sizes = [8, 8], strides = [1, 1]} : vector<8x96xf32> to vector<8x8xf32>
    %96 = vector.shape_cast %95 : vector<8x8xf32> to vector<1x8x8xf32>
    %97 = arith.truncf %92 : vector<1x8x8xf32> to vector<1x8x8xbf16>
    %98 = arith.truncf %94 : vector<1x8x8xf32> to vector<1x8x8xbf16>
    "tpu.trace_start"() <{level = 10 : i32, message = "bqd,bkd->bqk"}> : () -> ()
    %cst_23 = arith.constant dense<0.000000e+00> : vector<1x8x8xf32>
    %99 = tpu.matmul %97, %98, %cst_23 {dimension_numbers = #tpu.dot_dimension_numbers<[2], [2], [1], [1], [0, 0, 0, 1, 1, 1], [0], [0]>} : vector<1x8x8xbf16>, vector<1x8x8xbf16>, vector<1x8x8xf32> -> vector<1x8x8xf32>
    %cst_24 = arith.constant -1.000000e+30 : f32
    "tpu.trace_stop"() : () -> ()
    %100 = vector.broadcast %cst_24 : f32 to vector<1x8x8xf32>
    %101 = arith.select %15, %99, %100 : vector<1x8x8xi1>, vector<1x8x8xf32>
    %cst_25 = arith.constant dense<0xFF800000> : vector<1x8xf32>
    %102 = vector.multi_reduction <maximumf>, %101, %cst_25 [2] : vector<1x8x8xf32> to vector<1x8xf32>
    %103 = vector.shape_cast %102 : vector<1x8xf32> to vector<1x8x1xf32>
    %104 = vector.broadcast %103 : vector<1x8x1xf32> to vector<1x8x8xf32>
    %105 = arith.subf %101, %104 : vector<1x8x8xf32>
    %106 = math.exp %105 : vector<1x8x8xf32>
    %cst_26 = arith.constant dense<0.000000e+00> : vector<1x8xf32>
    %107 = vector.multi_reduction <add>, %106, %cst_26 [2] : vector<1x8x8xf32> to vector<1x8xf32>
    %108 = vector.shape_cast %107 : vector<1x8xf32> to vector<1x8x1xf32>
    %109 = tpu.reciprocal %108 {approx = true} : vector<1x8x1xf32> -> vector<1x8x1xf32>
    %110 = vector.broadcast %109 : vector<1x8x1xf32> to vector<1x8x8xf32>
    %111 = arith.mulf %106, %110 : vector<1x8x8xf32>
    %112 = arith.truncf %111 : vector<1x8x8xf32> to vector<1x8x8xbf16>
    %113 = arith.truncf %96 : vector<1x8x8xf32> to vector<1x8x8xbf16>
    "tpu.trace_start"() <{level = 10 : i32, message = "bqk,bkd->bqd"}> : () -> ()
    %cst_27 = arith.constant dense<0.000000e+00> : vector<1x8x8xf32>
    %114 = tpu.matmul %112, %113, %cst_27 {dimension_numbers = #tpu.dot_dimension_numbers<[2], [1], [1], [2], [0, 0, 0, 1, 1, 2], [0], [0]>} : vector<1x8x8xbf16>, vector<1x8x8xbf16>, vector<1x8x8xf32> -> vector<1x8x8xf32>
    "tpu.trace_stop"() : () -> ()
    %115 = vector.shape_cast %114 : vector<1x8x8xf32> to vector<8x8xf32>
    %116 = tpu.concatenate %40, %65, %90, %115 in 1 : vector<8x8xf32>, vector<8x8xf32>, vector<8x8xf32>, vector<8x8xf32> -> vector<8x32xf32>
    %117 = arith.truncf %116 : vector<8x32xf32> to vector<8x32xbf16>
    %c0_28 = arith.constant 0 : index
    %c0_29 = arith.constant 0 : index
    %c0_30 = arith.constant 0 : index
    %118 = vector.load %arg5[%c0_28, %c0_29, %c0_30] : memref<1x32x32xbf16, #tpu.memory_space<vmem>>, vector<1x32x32xbf16>
    %119 = vector.shape_cast %118 : vector<1x32x32xbf16> to vector<32x32xbf16>
    %cst_31 = arith.constant dense<0.000000e+00> : vector<8x32xf32>
    %120 = tpu.matmul %117, %119, %cst_31 {dimension_numbers = #tpu.dot_dimension_numbers<[1], [0], [0], [1], [0, 0, 1, 1], [], []>} : vector<8x32xbf16>, vector<32x32xbf16>, vector<8x32xf32> -> vector<8x32xf32>
    %c0_32 = arith.constant 0 : index
    %c0_33 = arith.constant 0 : index
    %c0_34 = arith.constant 0 : index
    %121 = vector.load %arg6[%c0_32, %c0_33, %c0_34] : memref<1x1x32xf32, #tpu.memory_space<vmem>>, vector<1x1x32xf32>
    %122 = vector.shape_cast %121 : vector<1x1x32xf32> to vector<1x32xf32>
    %123 = vector.broadcast %122 : vector<1x32xf32> to vector<8x32xf32>
    %124 = arith.addf %120, %123 : vector<8x32xf32>
    %125 = arith.addf %3, %124 : vector<8x32xf32>
    %c0_35 = arith.constant 0 : index
    %c0_36 = arith.constant 0 : index
    %c0_37 = arith.constant 0 : index
    %126 = vector.load %arg7[%c0_35, %c0_36, %c0_37] : memref<1x1x32xf32, #tpu.memory_space<vmem>>, vector<1x1x32xf32>
    %127 = vector.shape_cast %126 : vector<1x1x32xf32> to vector<1x32xf32>
    %c0_38 = arith.constant 0 : index
    %c0_39 = arith.constant 0 : index
    %c0_40 = arith.constant 0 : index
    %128 = vector.load %arg8[%c0_38, %c0_39, %c0_40] : memref<1x1x32xf32, #tpu.memory_space<vmem>>, vector<1x1x32xf32>
    %129 = vector.shape_cast %128 : vector<1x1x32xf32> to vector<1x32xf32>
    %cst_41 = arith.constant dense<0.000000e+00> : vector<8xf32>
    %130 = vector.multi_reduction <add>, %125, %cst_41 [1] : vector<8x32xf32> to vector<8xf32>
    %131 = vector.shape_cast %130 : vector<8xf32> to vector<8x1xf32>
    %cst_42 = arith.constant 3.200000e+01 : f32
    %132 = vector.broadcast %cst_42 : f32 to vector<8x1xf32>
    %133 = arith.divf %131, %132 : vector<8x1xf32>
    %134 = vector.broadcast %133 : vector<8x1xf32> to vector<8x32xf32>
    %135 = arith.subf %125, %134 : vector<8x32xf32>
    %136 = arith.mulf %135, %135 : vector<8x32xf32>
    %cst_43 = arith.constant dense<0.000000e+00> : vector<8xf32>
    %137 = vector.multi_reduction <add>, %136, %cst_43 [1] : vector<8x32xf32> to vector<8xf32>
    %138 = vector.shape_cast %137 : vector<8xf32> to vector<8x1xf32>
    %cst_44 = arith.constant 3.200000e+01 : f32
    %139 = vector.broadcast %cst_44 : f32 to vector<8x1xf32>
    %140 = arith.divf %138, %139 : vector<8x1xf32>
    %141 = vector.broadcast %133 : vector<8x1xf32> to vector<8x32xf32>
    %142 = arith.subf %125, %141 : vector<8x32xf32>
    %cst_45 = arith.constant 9.99999974E-6 : f32
    %143 = vector.broadcast %cst_45 : f32 to vector<8x1xf32>
    %144 = arith.addf %140, %143 : vector<8x1xf32>
    %145 = math.rsqrt %144 : vector<8x1xf32>
    %146 = vector.broadcast %145 : vector<8x1xf32> to vector<8x32xf32>
    %147 = arith.mulf %142, %146 : vector<8x32xf32>
    %148 = vector.broadcast %127 : vector<1x32xf32> to vector<8x32xf32>
    %149 = arith.mulf %147, %148 : vector<8x32xf32>
    %150 = vector.broadcast %129 : vector<1x32xf32> to vector<8x32xf32>
    %151 = arith.addf %149, %150 : vector<8x32xf32>
    %152 = arith.truncf %151 : vector<8x32xf32> to vector<8x32xbf16>
    %c0_46 = arith.constant 0 : index
    %c0_47 = arith.constant 0 : index
    %c0_48 = arith.constant 0 : index
    %153 = vector.load %arg9[%c0_46, %c0_47, %c0_48] : memref<1x32x64xbf16, #tpu.memory_space<vmem>>, vector<1x32x64xbf16>
    %154 = vector.shape_cast %153 : vector<1x32x64xbf16> to vector<32x64xbf16>
    %cst_49 = arith.constant dense<0.000000e+00> : vector<8x64xf32>
    %155 = tpu.matmul %152, %154, %cst_49 {dimension_numbers = #tpu.dot_dimension_numbers<[1], [0], [0], [1], [0, 0, 1, 1], [], []>} : vector<8x32xbf16>, vector<32x64xbf16>, vector<8x64xf32> -> vector<8x64xf32>
    %c0_50 = arith.constant 0 : index
    %c0_51 = arith.constant 0 : index
    %c0_52 = arith.constant 0 : index
    %156 = vector.load %arg10[%c0_50, %c0_51, %c0_52] : memref<1x1x64xf32, #tpu.memory_space<vmem>>, vector<1x1x64xf32>
    %157 = vector.shape_cast %156 : vector<1x1x64xf32> to vector<1x64xf32>
    %158 = vector.broadcast %157 : vector<1x64xf32> to vector<8x64xf32>
    %159 = arith.addf %155, %158 : vector<8x64xf32>
    %cst_53 = arith.constant 0.000000e+00 : f32
    %160 = vector.broadcast %cst_53 : f32 to vector<8x64xf32>
    %161 = arith.maximumf %159, %160 : vector<8x64xf32>
    %162 = arith.truncf %161 : vector<8x64xf32> to vector<8x64xbf16>
    %c0_54 = arith.constant 0 : index
    %c0_55 = arith.constant 0 : index
    %c0_56 = arith.constant 0 : index
    %163 = vector.load %arg11[%c0_54, %c0_55, %c0_56] : memref<1x64x32xbf16, #tpu.memory_space<vmem>>, vector<1x64x32xbf16>
    %164 = vector.shape_cast %163 : vector<1x64x32xbf16> to vector<64x32xbf16>
    %cst_57 = arith.constant dense<0.000000e+00> : vector<8x32xf32>
    %165 = tpu.matmul %162, %164, %cst_57 {dimension_numbers = #tpu.dot_dimension_numbers<[1], [0], [0], [1], [0, 0, 1, 1], [], []>} : vector<8x64xbf16>, vector<64x32xbf16>, vector<8x32xf32> -> vector<8x32xf32>
    %c0_58 = arith.constant 0 : index
    %c0_59 = arith.constant 0 : index
    %c0_60 = arith.constant 0 : index
    %166 = vector.load %arg12[%c0_58, %c0_59, %c0_60] : memref<1x1x32xf32, #tpu.memory_space<vmem>>, vector<1x1x32xf32>
    %167 = vector.shape_cast %166 : vector<1x1x32xf32> to vector<1x32xf32>
    %168 = vector.broadcast %167 : vector<1x32xf32> to vector<8x32xf32>
    %169 = arith.addf %165, %168 : vector<8x32xf32>
    %170 = arith.addf %151, %169 : vector<8x32xf32>
    %c0_61 = arith.constant 0 : index
    %c0_62 = arith.constant 0 : index
    %c0_63 = arith.constant 0 : index
    %171 = vector.load %arg13[%c0_61, %c0_62, %c0_63] : memref<1x1x32xf32, #tpu.memory_space<vmem>>, vector<1x1x32xf32>
    %172 = vector.shape_cast %171 : vector<1x1x32xf32> to vector<1x32xf32>
    %c0_64 = arith.constant 0 : index
    %c0_65 = arith.constant 0 : index
    %c0_66 = arith.constant 0 : index
    %173 = vector.load %arg14[%c0_64, %c0_65, %c0_66] : memref<1x1x32xf32, #tpu.memory_space<vmem>>, vector<1x1x32xf32>
    %174 = vector.shape_cast %173 : vector<1x1x32xf32> to vector<1x32xf32>
    %cst_67 = arith.constant dense<0.000000e+00> : vector<8xf32>
    %175 = vector.multi_reduction <add>, %170, %cst_67 [1] : vector<8x32xf32> to vector<8xf32>
    %176 = vector.shape_cast %175 : vector<8xf32> to vector<8x1xf32>
    %cst_68 = arith.constant 3.200000e+01 : f32
    %177 = vector.broadcast %cst_68 : f32 to vector<8x1xf32>
    %178 = arith.divf %176, %177 : vector<8x1xf32>
    %179 = vector.broadcast %178 : vector<8x1xf32> to vector<8x32xf32>
    %180 = arith.subf %170, %179 : vector<8x32xf32>
    %181 = arith.mulf %180, %180 : vector<8x32xf32>
    %cst_69 = arith.constant dense<0.000000e+00> : vector<8xf32>
    %182 = vector.multi_reduction <add>, %181, %cst_69 [1] : vector<8x32xf32> to vector<8xf32>
    %183 = vector.shape_cast %182 : vector<8xf32> to vector<8x1xf32>
    %cst_70 = arith.constant 3.200000e+01 : f32
    %184 = vector.broadcast %cst_70 : f32 to vector<8x1xf32>
    %185 = arith.divf %183, %184 : vector<8x1xf32>
    %186 = vector.broadcast %178 : vector<8x1xf32> to vector<8x32xf32>
    %187 = arith.subf %170, %186 : vector<8x32xf32>
    %cst_71 = arith.constant 9.99999974E-6 : f32
    %188 = vector.broadcast %cst_71 : f32 to vector<8x1xf32>
    %189 = arith.addf %185, %188 : vector<8x1xf32>
    %190 = math.rsqrt %189 : vector<8x1xf32>
    %191 = vector.broadcast %190 : vector<8x1xf32> to vector<8x32xf32>
    %192 = arith.mulf %187, %191 : vector<8x32xf32>
    %193 = vector.broadcast %172 : vector<1x32xf32> to vector<8x32xf32>
    %194 = arith.mulf %192, %193 : vector<8x32xf32>
    %195 = vector.broadcast %174 : vector<1x32xf32> to vector<8x32xf32>
    %196 = arith.addf %194, %195 : vector<8x32xf32>
    %c0_72 = arith.constant 0 : index
    %c0_73 = arith.constant 0 : index
    %197 = vector.load %arg15[%c0_72, %c0_73] : memref<8x32xf32, #tpu.memory_space<vmem>>, vector<8x32xf32>
    tpu.vector_store %arg15[%c0_72, %c0_73], %196 {strides = array<i32>} : memref<8x32xf32, #tpu.memory_space<vmem>>, vector<8x32xf32>,
    return
  }
  func.func @transform_1(%arg0: i32, %arg1: i32) -> (i32, i32, i32) {
    %c0_i32 = arith.constant 0 : i32
    %c0_i32_0 = arith.constant 0 : i32
    %c0_i32_1 = arith.constant 0 : i32
    return %arg1, %c0_i32, %c0_i32_0 : i32, i32, i32
  }
  func.func @transform_2(%arg0: i32, %arg1: i32) -> (i32, i32, i32) {
    %c0_i32 = arith.constant 0 : i32
    %c0_i32_0 = arith.constant 0 : i32
    %c0_i32_1 = arith.constant 0 : i32
    return %arg1, %c0_i32, %c0_i32_0 : i32, i32, i32
  }
  func.func @transform_3(%arg0: i32, %arg1: i32) -> (i32, i32, i32) {
    %c0_i32 = arith.constant 0 : i32
    %c0_i32_0 = arith.constant 0 : i32
    %c0_i32_1 = arith.constant 0 : i32
    return %arg1, %c0_i32, %c0_i32_0 : i32, i32, i32
  }
  func.func @transform_4(%arg0: i32, %arg1: i32) -> (i32, i32, i32) {
    %c0_i32 = arith.constant 0 : i32
    %c0_i32_0 = arith.constant 0 : i32
    %c0_i32_1 = arith.constant 0 : i32
    return %arg1, %c0_i32, %c0_i32_0 : i32, i32, i32
  }
  func.func @transform_5(%arg0: i32, %arg1: i32) -> (i32, i32, i32) {
    %c0_i32 = arith.constant 0 : i32
    %c0_i32_0 = arith.constant 0 : i32
    %c0_i32_1 = arith.constant 0 : i32
    return %arg1, %c0_i32, %c0_i32_0 : i32, i32, i32
  }
  func.func @transform_6(%arg0: i32, %arg1: i32) -> (i32, i32, i32) {
    %c0_i32 = arith.constant 0 : i32
    %c0_i32_0 = arith.constant 0 : i32
    %c0_i32_1 = arith.constant 0 : i32
    return %arg1, %c0_i32, %c0_i32_0 : i32, i32, i32
  }
  func.func @transform_7(%arg0: i32, %arg1: i32) -> (i32, i32, i32) {
    %c0_i32 = arith.constant 0 : i32
    %c0_i32_0 = arith.constant 0 : i32
    %c0_i32_1 = arith.constant 0 : i32
    return %arg1, %c0_i32, %c0_i32_0 : i32, i32, i32
  }
  func.func @transform_8(%arg0: i32, %arg1: i32) -> (i32, i32, i32) {
    %c0_i32 = arith.constant 0 : i32
    %c0_i32_0 = arith.constant 0 : i32
    %c0_i32_1 = arith.constant 0 : i32
    return %arg1, %c0_i32, %c0_i32_0 : i32, i32, i32
  }
  func.func @transform_9(%arg0: i32, %arg1: i32) -> (i32, i32, i32) {
    %c0_i32 = arith.constant 0 : i32
    %c0_i32_0 = arith.constant 0 : i32
    %c0_i32_1 = arith.constant 0 : i32
    return %arg1, %c0_i32, %c0_i32_0 : i32, i32, i32
  }
  func.func @transform_10(%arg0: i32, %arg1: i32) -> (i32, i32, i32) {
    %c0_i32 = arith.constant 0 : i32
    %c0_i32_0 = arith.constant 0 : i32
    %c0_i32_1 = arith.constant 0 : i32
    return %arg1, %c0_i32, %c0_i32_0 : i32, i32, i32
  }
  func.func @transform_11(%arg0: i32, %arg1: i32) -> (i32, i32, i32) {
    %c0_i32 = arith.constant 0 : i32
    %c0_i32_0 = arith.constant 0 : i32
    %c0_i32_1 = arith.constant 0 : i32
    return %arg1, %c0_i32, %c0_i32_0 : i32, i32, i32
  }
  func.func @transform_12(%arg0: i32, %arg1: i32) -> (i32, i32, i32) {
    %c0_i32 = arith.constant 0 : i32
    %c0_i32_0 = arith.constant 0 : i32
    %c0_i32_1 = arith.constant 0 : i32
    return %arg1, %c0_i32, %c0_i32_0 : i32, i32, i32
  }
  func.func @transform_13(%arg0: i32, %arg1: i32) -> (i32, i32) {
    %c0_i32 = arith.constant 0 : i32
    %c0_i32_0 = arith.constant 0 : i32
    return %arg0, %c0_i32 : i32, i32
  }
}

</mosaic_0001>

<llo_original>
// kernel: tpu_custom_call.1
$region0: #{tpu_custom_call.1}
  #allocation0 [shape = 'u32[]', space=smem, size = 0x4, offset = 0x4, fixed_abs, tag = 'smem constant byte address 0x4 - core index']
  #allocation1 [shape = 'u32[144,128]{1,0:T(1,128)}', space=vmem, size = 0x12000, scoped, tag = 'internal scratch']
  #allocation24 [shape = 's32[]', space=sflag, size = 0x4, offset = 0, fixed_abs, tag = 'sflag constant byte address 0x0 - dummy sync flag']
  #allocation25 [shape = 's32[]', space=sflag, size = 0x4, offset = 0, fixed_abs, tag = 'sflag constant byte address 0x0 - dummy sync flag']
  #allocation26 [shape = 'u32[]', space=smem, size = 0x4, offset = 0x44, fixed_abs, tag = 'smem constant byte address 0x44 - assertion arg 0']
  #allocation27 [shape = 'u32[]', space=smem, size = 0x4, offset = 0x48, fixed_abs, tag = 'smem constant byte address 0x48 - assertion arg 1']
  %s0 = inlined_call_operand.hbm [shape: f32[16,32], index: 0, kind: input, shape index: {}]
  %s1 = inlined_call_operand.hbm [shape: bf16[2,32,96], index: 1, kind: input, shape index: {}]
  %s2 = inlined_call_operand.hbm [shape: f32[2,1,96], index: 2, kind: input, shape index: {}]
  %s3 = inlined_call_operand.hbm [shape: bf16[2,32,32], index: 3, kind: input, shape index: {}]
  %s4 = inlined_call_operand.hbm [shape: f32[2,1,32], index: 4, kind: input, shape index: {}]
  %s5 = inlined_call_operand.hbm [shape: f32[2,1,32], index: 5, kind: input, shape index: {}]
  %s6 = inlined_call_operand.hbm [shape: f32[2,1,32], index: 6, kind: input, shape index: {}]
  %s7 = inlined_call_operand.hbm [shape: bf16[2,32,64], index: 7, kind: input, shape index: {}]
  %s8 = inlined_call_operand.hbm [shape: f32[2,1,64], index: 8, kind: input, shape index: {}]
  %s9 = inlined_call_operand.hbm [shape: bf16[2,64,32], index: 9, kind: input, shape index: {}]
  %s10 = inlined_call_operand.hbm [shape: f32[2,1,32], index: 10, kind: input, shape index: {}]
  %s11 = inlined_call_operand.hbm [shape: f32[2,1,32], index: 11, kind: input, shape index: {}]
  %s12 = inlined_call_operand.hbm [shape: f32[2,1,32], index: 12, kind: input, shape index: {}]
  %s13 = inlined_call_operand.hbm [shape: f32[16,32], index: 13, kind: output, shape index: {}]
  %s14 = sld [smem:[#allocation0]]
  $region138: #{tpu_custom_call.1} parent=0
    _
  %s16 = ssub.s32 1, %s14
  %s17 = scalar_select 0, %s16, %s14
  $region1: #{tpu_custom_call.1} parent=0
    #allocation2 [shape = 'u8[16384]{0}', space=vmem, size = 0x4000, scoped, tag = 'input window, operand 1']
    #allocation3 [shape = 's32[2]{0}', space=sflag, size = 0x8, scoped, tag = 'scoped memory for tpu_custom_call.1']
    #allocation4 [shape = 's32[2]{0}', space=sflag, size = 0x8, scoped, tag = 'scoped memory for tpu_custom_call.1']
    #allocation5 [shape = 'u8[1024]{0}', space=vmem, size = 0x400, scoped, tag = 'input window, operand 2']
    #allocation6 [shape = 's32[2]{0}', space=sflag, size = 0x8, scoped, tag = 'scoped memory for tpu_custom_call.1']
    #allocation7 [shape = 'u8[16384]{0}', space=vmem, size = 0x4000, scoped, tag = 'input window, operand 3']
    #allocation8 [shape = 'u8[1024]{0}', space=vmem, size = 0x400, scoped, tag = 'input window, operand 4']
    #allocation9 [shape = 's32[2]{0}', space=sflag, size = 0x8, scoped, tag = 'scoped memory for tpu_custom_call.1']
    #allocation10 [shape = 'u8[1024]{0}', space=vmem, size = 0x400, scoped, tag = 'input window, operand 5']
    #allocation11 [shape = 'u8[1024]{0}', space=vmem, size = 0x400, scoped, tag = 'input window, operand 6']
    #allocation12 [shape = 's32[2]{0}', space=sflag, size = 0x8, scoped, tag = 'scoped memory for tpu_custom_call.1']
    #allocation13 [shape = 'u8[16384]{0}', space=vmem, size = 0x4000, scoped, tag = 'input window, operand 7']
    #allocation14 [shape = 'u8[1024]{0}', space=vmem, size = 0x400, scoped, tag = 'input window, operand 8']
    #allocation15 [shape = 's32[2]{0}', space=sflag, size = 0x8, scoped, tag = 'scoped memory for tpu_custom_call.1']
    #allocation16 [shape = 'u8[32768]{0}', space=vmem, size = 0x8000, scoped, tag = 'input window, operand 9']
    #allocation17 [shape = 'u8[1024]{0}', space=vmem, size = 0x400, scoped, tag = 'input window, operand 10']
    #allocation18 [shape = 's32[2]{0}', space=sflag, size = 0x8, scoped, tag = 'scoped memory for tpu_custom_call.1']
    #allocation19 [shape = 'u8[1024]{0}', space=vmem, size = 0x400, scoped, tag = 'input window, operand 11']
    #allocation20 [shape = 'u8[1024]{0}', space=vmem, size = 0x400, scoped, tag = 'input window, operand 12']
    #allocation21 [shape = 's32[2]{0}', space=sflag, size = 0x8, scoped, tag = 'scoped memory for tpu_custom_call.1']
    #allocation22 [shape = 'u8[8192]{0}', space=vmem, size = 0x2000, scoped, tag = 'output window, operand 0']
    %18 = vsyncpa [#allocation3], 0
    %s19 = scalar_lea.sflag [#allocation3], 1
    %20 = vsyncpa %s19, 0
    %21 = vsyncpa [#allocation6], 0
    %s22 = scalar_lea.sflag [#allocation6], 1
    %23 = vsyncpa %s22, 0
    %24 = vsyncpa [#allocation9], 0
    %s25 = scalar_lea.sflag [#allocation9], 1
    %26 = vsyncpa %s25, 0
    %27 = vsyncpa [#allocation12], 0
    %s28 = scalar_lea.sflag [#allocation12], 1
    %29 = vsyncpa %s28, 0
    %30 = vsyncpa [#allocation15], 0
    %s31 = scalar_lea.sflag [#allocation15], 1
    %32 = vsyncpa %s31, 0
    %33 = vsyncpa [#allocation18], 0
    %s34 = scalar_lea.sflag [#allocation18], 1
    %35 = vsyncpa %s34, 0
    %36 = vsyncpa [#allocation21], 0
    %s37 = scalar_lea.sflag [#allocation21], 1
    %38 = vsyncpa %s37, 0
    %39 = vsyncpa [#allocation4], 0
    %s40 = scalar_lea.sflag [#allocation4], 1
    %41 = vsyncpa %s40, 0
    loop: start=0, step=1, limit=6
    $region2: #{tpu_custom_call.1} parent=1 // loop_pre_header
      _
    $region3: #{tpu_custom_call.1} parent=1 // loop_header
      %s43 = sphi 0, %s47
      %p44 = scmp.ge.s32.totalorder %s43, 6
      %s50 = sphi 0, %s62
      %s51 = sphi 0, %s58
      %s52 = sphi 0, %s50
      %s53 = sphi 0, %s51
      %s54 = sphi 0, %s52
      %s55 = sphi 0, %s53
      %s65 = sphi 0, %s67
      %s68 = sphi 0, %s65
      %s69 = sphi 0, %s68
      %s85 = sphi 0, %s69
      %s91 = sphi 0, %s93
      %s94 = sphi 0, %s91
      %s95 = sphi 0, %s94
      %s111 = sphi 0, %s95
      %s117 = sphi 0, %s119
      %s120 = sphi 0, %s117
      %s121 = sphi 0, %s120
      %s137 = sphi 0, %s121
      %s143 = sphi 0, %s145
      %s146 = sphi 0, %s143
      %s147 = sphi 0, %s146
      %s163 = sphi 0, %s147
      %s169 = sphi 0, %s171
      %s172 = sphi 0, %s169
      %s173 = sphi 0, %s172
      %s189 = sphi 0, %s173
      %s195 = sphi 0, %s197
      %s198 = sphi 0, %s195
      %s199 = sphi 0, %s198
      %s215 = sphi 0, %s199
      %s221 = sphi 0, %s223
      %s224 = sphi 0, %s221
      %s225 = sphi 0, %s224
      %s241 = sphi 0, %s225
      %s247 = sphi 0, %s249
      %s250 = sphi 0, %s247
      %s251 = sphi 0, %s250
      %s267 = sphi 0, %s251
      %s273 = sphi 0, %s275
      %s276 = sphi 0, %s273
      %s277 = sphi 0, %s276
      %s293 = sphi 0, %s277
      %s299 = sphi 0, %s301
      %s302 = sphi 0, %s299
      %s303 = sphi 0, %s302
      %s319 = sphi 0, %s303
      %s325 = sphi 0, %s327
      %s328 = sphi 0, %s325
      %s329 = sphi 0, %s328
      %s345 = sphi 0, %s329
      %s351 = sphi 0, %s353
      %s354 = sphi 0, %s351
      %s355 = sphi 0, %s354
      %s371 = sphi 0, %s355
      %s377 = sphi 0, %s379
      %s380 = sphi 0, %s377
      %s381 = sphi 0, %s380
      %s397 = sphi 0, %s381
    $region4: #{tpu_custom_call.1} parent=1 // loop_header_branch
      %46 = sbr.rel (%p44) target = $region8
    $region5: #{tpu_custom_call.1} parent=1 // loop_body
      %s48 = ssub.s32 %s43, 1
      %s49 = ssub.s32 %s43, 2
      %s56 = sadd.s32 1, %s51
      %p57 = scmp.ge.s32.totalorder %s56, 2
      %s58 = scalar_select %p57, 0, %s56
      %s59 = sadd.s32 1, %s50
      %s60 = scalar_select %p57, %s59, %s50
      %p61 = scmp.ge.s32.totalorder %s60, 2
      %s62 = scalar_select %p61, 0, %s60
      %s63 = ssub.s32 %s51, %s58
      %p64 = scmp.eq.s32.totalorder %s63, 0
      %s66 = sadd.s32 %s65, 1
      %s67 = scalar_select %p64, %s65, %s66
      %p70 = pneg %p64
      %p71 = scmp.eq.s32.totalorder %s43, 3
      %p72 = por %p70, %p71
      %p73 = scmp.ne.s32.totalorder %s65, %s68
      %p74 = scmp.eq.s32.totalorder %s43, 0
      %p75 = por %p73, %p74
      %p76 = scmp.ne.s32.totalorder %s65, %s68
      %p77 = scmp.eq.s32.totalorder %s48, 3
      %p78 = por %p76, %p77
      %p79 = scmp.ne.s32.totalorder %s68, %s69
      %p80 = scmp.eq.s32.totalorder %s48, 0
      %p81 = por %p79, %p80
      %p82 = scmp.ne.s32.totalorder %s68, %s69
      %p83 = scmp.eq.s32.totalorder %s49, 3
      %p84 = por %p82, %p83
      %p86 = scmp.ne.s32.totalorder %s69, %s85
      %p87 = scmp.eq.s32.totalorder %s49, 0
      %p88 = por %p86, %p87
      %s89 = ssub.s32 %s51, %s58
      %p90 = scmp.eq.s32.totalorder %s89, 0
      %s92 = sadd.s32 %s91, 1
      %s93 = scalar_select %p90, %s91, %s92
      %p96 = pneg %p90
      %p97 = scmp.eq.s32.totalorder %s43, 3
      %p98 = por %p96, %p97
      %p99 = scmp.ne.s32.totalorder %s91, %s94
      %p100 = scmp.eq.s32.totalorder %s43, 0
      %p101 = por %p99, %p100
      %p102 = scmp.ne.s32.totalorder %s91, %s94
      %p103 = scmp.eq.s32.totalorder %s48, 3
      %p104 = por %p102, %p103
      %p105 = scmp.ne.s32.totalorder %s94, %s95
      %p106 = scmp.eq.s32.totalorder %s48, 0
      %p107 = por %p105, %p106
      %p108 = scmp.ne.s32.totalorder %s94, %s95
      %p109 = scmp.eq.s32.totalorder %s49, 3
      %p110 = por %p108, %p109
      %p112 = scmp.ne.s32.totalorder %s95, %s111
      %p113 = scmp.eq.s32.totalorder %s49, 0
      %p114 = por %p112, %p113
      %s115 = ssub.s32 %s51, %s58
      %p116 = scmp.eq.s32.totalorder %s115, 0
      %s118 = sadd.s32 %s117, 1
      %s119 = scalar_select %p116, %s117, %s118
      %p122 = pneg %p116
      %p123 = scmp.eq.s32.totalorder %s43, 3
      %p124 = por %p122, %p123
      %p125 = scmp.ne.s32.totalorder %s117, %s120
      %p126 = scmp.eq.s32.totalorder %s43, 0
      %p127 = por %p125, %p126
      %p128 = scmp.ne.s32.totalorder %s117, %s120
      %p129 = scmp.eq.s32.totalorder %s48, 3
      %p130 = por %p128, %p129
      %p131 = scmp.ne.s32.totalorder %s120, %s121
      %p132 = scmp.eq.s32.totalorder %s48, 0
      %p133 = por %p131, %p132
      %p134 = scmp.ne.s32.totalorder %s120, %s121
      %p135 = scmp.eq.s32.totalorder %s49, 3
      %p136 = por %p134, %p135
      %p138 = scmp.ne.s32.totalorder %s121, %s137
      %p139 = scmp.eq.s32.totalorder %s49, 0
      %p140 = por %p138, %p139
      %s141 = ssub.s32 %s51, %s58
      %p142 = scmp.eq.s32.totalorder %s141, 0
      %s144 = sadd.s32 %s143, 1
      %s145 = scalar_select %p142, %s143, %s144
      %p148 = pneg %p142
      %p149 = scmp.eq.s32.totalorder %s43, 3
      %p150 = por %p148, %p149
      %p151 = scmp.ne.s32.totalorder %s143, %s146
      %p152 = scmp.eq.s32.totalorder %s43, 0
      %p153 = por %p151, %p152
      %p154 = scmp.ne.s32.totalorder %s143, %s146
      %p155 = scmp.eq.s32.totalorder %s48, 3
      %p156 = por %p154, %p155
      %p157 = scmp.ne.s32.totalorder %s146, %s147
      %p158 = scmp.eq.s32.totalorder %s48, 0
      %p159 = por %p157, %p158
      %p160 = scmp.ne.s32.totalorder %s146, %s147
      %p161 = scmp.eq.s32.totalorder %s49, 3
      %p162 = por %p160, %p161
      %p164 = scmp.ne.s32.totalorder %s147, %s163
      %p165 = scmp.eq.s32.totalorder %s49, 0
      %p166 = por %p164, %p165
      %s167 = ssub.s32 %s51, %s58
      %p168 = scmp.eq.s32.totalorder %s167, 0
      %s170 = sadd.s32 %s169, 1
      %s171 = scalar_select %p168, %s169, %s170
      %p174 = pneg %p168
      %p175 = scmp.eq.s32.totalorder %s43, 3
      %p176 = por %p174, %p175
      %p177 = scmp.ne.s32.totalorder %s169, %s172
      %p178 = scmp.eq.s32.totalorder %s43, 0
      %p179 = por %p177, %p178
      %p180 = scmp.ne.s32.totalorder %s169, %s172
      %p181 = scmp.eq.s32.totalorder %s48, 3
      %p182 = por %p180, %p181
      %p183 = scmp.ne.s32.totalorder %s172, %s173
      %p184 = scmp.eq.s32.totalorder %s48, 0
      %p185 = por %p183, %p184
      %p186 = scmp.ne.s32.totalorder %s172, %s173
      %p187 = scmp.eq.s32.totalorder %s49, 3
      %p188 = por %p186, %p187
      %p190 = scmp.ne.s32.totalorder %s173, %s189
      %p191 = scmp.eq.s32.totalorder %s49, 0
      %p192 = por %p190, %p191
      %s193 = ssub.s32 %s51, %s58
      %p194 = scmp.eq.s32.totalorder %s193, 0
      %s196 = sadd.s32 %s195, 1
      %s197 = scalar_select %p194, %s195, %s196
      %p200 = pneg %p194
      %p201 = scmp.eq.s32.totalorder %s43, 3
      %p202 = por %p200, %p201
      %p203 = scmp.ne.s32.totalorder %s195, %s198
      %p204 = scmp.eq.s32.totalorder %s43, 0
      %p205 = por %p203, %p204
      %p206 = scmp.ne.s32.totalorder %s195, %s198
      %p207 = scmp.eq.s32.totalorder %s48, 3
      %p208 = por %p206, %p207
      %p209 = scmp.ne.s32.totalorder %s198, %s199
      %p210 = scmp.eq.s32.totalorder %s48, 0
      %p211 = por %p209, %p210
      %p212 = scmp.ne.s32.totalorder %s198, %s199
      %p213 = scmp.eq.s32.totalorder %s49, 3
      %p214 = por %p212, %p213
      %p216 = scmp.ne.s32.totalorder %s199, %s215
      %p217 = scmp.eq.s32.totalorder %s49, 0
      %p218 = por %p216, %p217
      %s219 = ssub.s32 %s51, %s58
      %p220 = scmp.eq.s32.totalorder %s219, 0
      %s222 = sadd.s32 %s221, 1
      %s223 = scalar_select %p220, %s221, %s222
      %p226 = pneg %p220
      %p227 = scmp.eq.s32.totalorder %s43, 3
      %p228 = por %p226, %p227
      %p229 = scmp.ne.s32.totalorder %s221, %s224
      %p230 = scmp.eq.s32.totalorder %s43, 0
      %p231 = por %p229, %p230
      %p232 = scmp.ne.s32.totalorder %s221, %s224
      %p233 = scmp.eq.s32.totalorder %s48, 3
      %p234 = por %p232, %p233
      %p235 = scmp.ne.s32.totalorder %s224, %s225
      %p236 = scmp.eq.s32.totalorder %s48, 0
      %p237 = por %p235, %p236
      %p238 = scmp.ne.s32.totalorder %s224, %s225
      %p239 = scmp.eq.s32.totalorder %s49, 3
      %p240 = por %p238, %p239
      %p242 = scmp.ne.s32.totalorder %s225, %s241
      %p243 = scmp.eq.s32.totalorder %s49, 0
      %p244 = por %p242, %p243
      %s245 = ssub.s32 %s51, %s58
      %p246 = scmp.eq.s32.totalorder %s245, 0
      %s248 = sadd.s32 %s247, 1
      %s249 = scalar_select %p246, %s247, %s248
      %p252 = pneg %p246
      %p253 = scmp.eq.s32.totalorder %s43, 3
      %p254 = por %p252, %p253
      %p255 = scmp.ne.s32.totalorder %s247, %s250
      %p256 = scmp.eq.s32.totalorder %s43, 0
      %p257 = por %p255, %p256
      %p258 = scmp.ne.s32.totalorder %s247, %s250
      %p259 = scmp.eq.s32.totalorder %s48, 3
      %p260 = por %p258, %p259
      %p261 = scmp.ne.s32.totalorder %s250, %s251
      %p262 = scmp.eq.s32.totalorder %s48, 0
      %p263 = por %p261, %p262
      %p264 = scmp.ne.s32.totalorder %s250, %s251
      %p265 = scmp.eq.s32.totalorder %s49, 3
      %p266 = por %p264, %p265
      %p268 = scmp.ne.s32.totalorder %s251, %s267
      %p269 = scmp.eq.s32.totalorder %s49, 0
      %p270 = por %p268, %p269
      %s271 = ssub.s32 %s51, %s58
      %p272 = scmp.eq.s32.totalorder %s271, 0
      %s274 = sadd.s32 %s273, 1
      %s275 = scalar_select %p272, %s273, %s274
      %p278 = pneg %p272
      %p279 = scmp.eq.s32.totalorder %s43, 3
      %p280 = por %p278, %p279
      %p281 = scmp.ne.s32.totalorder %s273, %s276
      %p282 = scmp.eq.s32.totalorder %s43, 0
      %p283 = por %p281, %p282
      %p284 = scmp.ne.s32.totalorder %s273, %s276
      %p285 = scmp.eq.s32.totalorder %s48, 3
      %p286 = por %p284, %p285
      %p287 = scmp.ne.s32.totalorder %s276, %s277
      %p288 = scmp.eq.s32.totalorder %s48, 0
      %p289 = por %p287, %p288
      %p290 = scmp.ne.s32.totalorder %s276, %s277
      %p291 = scmp.eq.s32.totalorder %s49, 3
      %p292 = por %p290, %p291
      %p294 = scmp.ne.s32.totalorder %s277, %s293
      %p295 = scmp.eq.s32.totalorder %s49, 0
      %p296 = por %p294, %p295
      %s297 = ssub.s32 %s51, %s58
      %p298 = scmp.eq.s32.totalorder %s297, 0
      %s300 = sadd.s32 %s299, 1
      %s301 = scalar_select %p298, %s299, %s300
      %p304 = pneg %p298
      %p305 = scmp.eq.s32.totalorder %s43, 3
      %p306 = por %p304, %p305
      %p307 = scmp.ne.s32.totalorder %s299, %s302
      %p308 = scmp.eq.s32.totalorder %s43, 0
      %p309 = por %p307, %p308
      %p310 = scmp.ne.s32.totalorder %s299, %s302
      %p311 = scmp.eq.s32.totalorder %s48, 3
      %p312 = por %p310, %p311
      %p313 = scmp.ne.s32.totalorder %s302, %s303
      %p314 = scmp.eq.s32.totalorder %s48, 0
      %p315 = por %p313, %p314
      %p316 = scmp.ne.s32.totalorder %s302, %s303
      %p317 = scmp.eq.s32.totalorder %s49, 3
      %p318 = por %p316, %p317
      %p320 = scmp.ne.s32.totalorder %s303, %s319
      %p321 = scmp.eq.s32.totalorder %s49, 0
      %p322 = por %p320, %p321
      %s323 = ssub.s32 %s51, %s58
      %p324 = scmp.eq.s32.totalorder %s323, 0
      %s326 = sadd.s32 %s325, 1
      %s327 = scalar_select %p324, %s325, %s326
      %p330 = pneg %p324
      %p331 = scmp.eq.s32.totalorder %s43, 3
      %p332 = por %p330, %p331
      %p333 = scmp.ne.s32.totalorder %s325, %s328
      %p334 = scmp.eq.s32.totalorder %s43, 0
      %p335 = por %p333, %p334
      %p336 = scmp.ne.s32.totalorder %s325, %s328
      %p337 = scmp.eq.s32.totalorder %s48, 3
      %p338 = por %p336, %p337
      %p339 = scmp.ne.s32.totalorder %s328, %s329
      %p340 = scmp.eq.s32.totalorder %s48, 0
      %p341 = por %p339, %p340
      %p342 = scmp.ne.s32.totalorder %s328, %s329
      %p343 = scmp.eq.s32.totalorder %s49, 3
      %p344 = por %p342, %p343
      %p346 = scmp.ne.s32.totalorder %s329, %s345
      %p347 = scmp.eq.s32.totalorder %s49, 0
      %p348 = por %p346, %p347
      %s349 = ssub.s32 %s51, %s58
      %p350 = scmp.eq.s32.totalorder %s349, 0
      %s352 = sadd.s32 %s351, 1
      %s353 = scalar_select %p350, %s351, %s352
      %p356 = pneg %p350
      %p357 = scmp.eq.s32.totalorder %s43, 3
      %p358 = por %p356, %p357
      %p359 = scmp.ne.s32.totalorder %s351, %s354
      %p360 = scmp.eq.s32.totalorder %s43, 0
      %p361 = por %p359, %p360
      %p362 = scmp.ne.s32.totalorder %s351, %s354
      %p363 = scmp.eq.s32.totalorder %s48, 3
      %p364 = por %p362, %p363
      %p365 = scmp.ne.s32.totalorder %s354, %s355
      %p366 = scmp.eq.s32.totalorder %s48, 0
      %p367 = por %p365, %p366
      %p368 = scmp.ne.s32.totalorder %s354, %s355
      %p369 = scmp.eq.s32.totalorder %s49, 3
      %p370 = por %p368, %p369
      %p372 = scmp.ne.s32.totalorder %s355, %s371
      %p373 = scmp.eq.s32.totalorder %s49, 0
      %p374 = por %p372, %p373
      %s375 = ssub.s32 %s50, %s62
      %p376 = scmp.eq.s32.totalorder %s375, 0
      %s378 = sadd.s32 %s377, 1
      %s379 = scalar_select %p376, %s377, %s378
      %p382 = pneg %p376
      %p383 = scmp.eq.s32.totalorder %s43, 3
      %p384 = por %p382, %p383
      %p385 = scmp.ne.s32.totalorder %s377, %s380
      %p386 = scmp.eq.s32.totalorder %s43, 0
      %p387 = por %p385, %p386
      %p388 = scmp.ne.s32.totalorder %s377, %s380
      %p389 = scmp.eq.s32.totalorder %s48, 3
      %p390 = por %p388, %p389
      %p391 = scmp.ne.s32.totalorder %s380, %s381
      %p392 = scmp.eq.s32.totalorder %s48, 0
      %p393 = por %p391, %p392
      %p394 = scmp.ne.s32.totalorder %s380, %s381
      %p395 = scmp.eq.s32.totalorder %s49, 3
      %p396 = por %p394, %p395
      %p398 = scmp.ne.s32.totalorder %s381, %s397
      %p399 = scmp.eq.s32.totalorder %s49, 0
      %p400 = por %p398, %p399
      %p401 = scmp.le.s32.totalorder 1, %s43
      %p402 = scmp.lt.s32.totalorder %s43, 5
      %p403 = pnand %p401, %p402
      %p404 = pneg %p403
      // Predicated region
      $region9: #{tpu_custom_call.1} parent=5 // pred_check
        _
      $region10: #{tpu_custom_call.1} parent=5 // pred_check_branch
        %406 = sbr.rel (%p403) target = $region12
      $region11: #{tpu_custom_call.1} parent=5 // pred_region
        %s407 = ssub.s32 %s43, 1
      $region12: #{tpu_custom_call.1} parent=5 // pred_fallthru
        _
      %p408 = scmp.lt.s32.totalorder %s43, 4
      // Predicated region
      $region13: #{tpu_custom_call.1} parent=5 // pred_check
        %p409 = pneg %p408
      $region14: #{tpu_custom_call.1} parent=5 // pred_check_branch
        %411 = sbr.rel (%p409) target = $region16
      $region15: #{tpu_custom_call.1} parent=5 // pred_region
        // Predicated region
        $region17: #{tpu_custom_call.1} parent=15 // pred_check
          %p412 = pneg %p75
        $region18: #{tpu_custom_call.1} parent=15 // pred_check_branch
          %414 = sbr.rel (%p412) target = $region20
        $region19: #{tpu_custom_call.1} parent=15 // pred_region
          %s415 = sand.u32 %s65, 1
          %s416 = scalar_lea.sflag [#allocation3], %s415
          %s417 = sand.u32 %s65, 1
          %s418 = smul.addr %s417, 16
          %s419 = scalar_lea.vmem [#allocation2], %s418
          %s421 = ssub.s32 256, 256
          %422 = vsyncadd %s416, %s421
          %s423 = smul.addr %s51, 4
          %s424 = smul.addr %s423, 64
          %s425 = scalar_lea.hbm %s1, %s424
          %s426 = sshll.u32 %s419, 4
          %s427 = int_to_ptr.vmem [resolvable:$true] %s426
          %432 = dma.hbm_to_vmem [thread:$0]  %s425, 256, %s427, %s416, 64, 64, 4
        $region20: #{tpu_custom_call.1} parent=15 // pred_fallthru
          _
        // Predicated region
        $region21: #{tpu_custom_call.1} parent=15 // pred_check
          %p433 = pneg %p101
        $region22: #{tpu_custom_call.1} parent=15 // pred_check_branch
          %435 = sbr.rel (%p433) target = $region24
        $region23: #{tpu_custom_call.1} parent=15 // pred_region
          %s436 = sand.u32 %s43, 1
          %s437 = scalar_lea.sflag [#allocation6], %s436
          %s438 = sand.u32 %s91, 1
          %s439 = scalar_lea.vmem [#allocation5], %s438
          %s441 = ssub.s32 16, 16
          %442 = vsyncadd %s437, %s441
          %s443 = smul.addr %s51, 16
          %s444 = scalar_lea.hbm %s2, %s443
          %s446 = sshll.u32 %s439, 4
          %s447 = int_to_ptr.vmem [resolvable:$true] %s446
          %449 = dma.hbm_to_vmem [thread:$0]  %s444, 16, %s447, %s437
        $region24: #{tpu_custom_call.1} parent=15 // pred_fallthru
          _
        // Predicated region
        $region25: #{tpu_custom_call.1} parent=15 // pred_check
          %p450 = pneg %p127
        $region26: #{tpu_custom_call.1} parent=15 // pred_check_branch
          %452 = sbr.rel (%p450) target = $region28
        $region27: #{tpu_custom_call.1} parent=15 // pred_region
          %s453 = sand.u32 %s43, 1
          %s454 = scalar_lea.sflag [#allocation6], %s453
          %s455 = sand.u32 %s117, 1
          %s456 = smul.addr %s455, 16
          %s457 = scalar_lea.vmem [#allocation7], %s456
          %s459 = ssub.s32 256, 256
          %460 = vsyncadd %s454, %s459
          %s461 = smul.addr %s51, 4
          %s462 = smul.addr %s461, 64
          %s463 = scalar_lea.hbm %s3, %s462
          %s464 = sshll.u32 %s457, 4
          %s465 = int_to_ptr.vmem [resolvable:$true] %s464
          %470 = dma.hbm_to_vmem [thread:$0]  %s463, 256, %s465, %s454, 64, 64, 4
        $region28: #{tpu_custom_call.1} parent=15 // pred_fallthru
          _
        // Predicated region
        $region29: #{tpu_custom_call.1} parent=15 // pred_check
          %p471 = pneg %p153
        $region30: #{tpu_custom_call.1} parent=15 // pred_check_branch
          %473 = sbr.rel (%p471) target = $region32
        $region31: #{tpu_custom_call.1} parent=15 // pred_region
          %s474 = sand.u32 %s43, 1
          %s475 = scalar_lea.sflag [#allocation9], %s474
          %s476 = sand.u32 %s143, 1
          %s477 = scalar_lea.vmem [#allocation8], %s476
          %s479 = ssub.s32 16, 16
          %480 = vsyncadd %s475, %s479
          %s481 = smul.addr %s51, 16
          %s482 = scalar_lea.hbm %s4, %s481
          %s484 = sshll.u32 %s477, 4
          %s485 = int_to_ptr.vmem [resolvable:$true] %s484
          %487 = dma.hbm_to_vmem [thread:$0]  %s482, 16, %s485, %s475
        $region32: #{tpu_custom_call.1} parent=15 // pred_fallthru
          _
        // Predicated region
        $region33: #{tpu_custom_call.1} parent=15 // pred_check
          %p488 = pneg %p179
        $region34: #{tpu_custom_call.1} parent=15 // pred_check_branch
          %490 = sbr.rel (%p488) target = $region36
        $region35: #{tpu_custom_call.1} parent=15 // pred_region
          %s491 = sand.u32 %s43, 1
          %s492 = scalar_lea.sflag [#allocation9], %s491
          %s493 = sand.u32 %s169, 1
          %s494 = scalar_lea.vmem [#allocation10], %s493
          %s496 = ssub.s32 16, 16
          %497 = vsyncadd %s492, %s496
          %s498 = smul.addr %s51, 16
          %s499 = scalar_lea.hbm %s5, %s498
          %s501 = sshll.u32 %s494, 4
          %s502 = int_to_ptr.vmem [resolvable:$true] %s501
          %504 = dma.hbm_to_vmem [thread:$0]  %s499, 16, %s502, %s492
        $region36: #{tpu_custom_call.1} parent=15 // pred_fallthru
          _
        // Predicated region
        $region37: #{tpu_custom_call.1} parent=15 // pred_check
          %p505 = pneg %p205
        $region38: #{tpu_custom_call.1} parent=15 // pred_check_branch
          %507 = sbr.rel (%p505) target = $region40
        $region39: #{tpu_custom_call.1} parent=15 // pred_region
          %s508 = sand.u32 %s43, 1
          %s509 = scalar_lea.sflag [#allocation12], %s508
          %s510 = sand.u32 %s195, 1
          %s511 = scalar_lea.vmem [#allocation11], %s510
          %s513 = ssub.s32 16, 16
          %514 = vsyncadd %s509, %s513
          %s515 = smul.addr %s51, 16
          %s516 = scalar_lea.hbm %s6, %s515
          %s518 = sshll.u32 %s511, 4
          %s519 = int_to_ptr.vmem [resolvable:$true] %s518
          %521 = dma.hbm_to_vmem [thread:$0]  %s516, 16, %s519, %s509
        $region40: #{tpu_custom_call.1} parent=15 // pred_fallthru
          _
        // Predicated region
        $region41: #{tpu_custom_call.1} parent=15 // pred_check
          %p522 = pneg %p231
        $region42: #{tpu_custom_call.1} parent=15 // pred_check_branch
          %524 = sbr.rel (%p522) target = $region44
        $region43: #{tpu_custom_call.1} parent=15 // pred_region
          %s525 = sand.u32 %s43, 1
          %s526 = scalar_lea.sflag [#allocation12], %s525
          %s527 = sand.u32 %s221, 1
          %s528 = smul.addr %s527, 16
          %s529 = scalar_lea.vmem [#allocation13], %s528
          %s531 = ssub.s32 256, 256
          %532 = vsyncadd %s526, %s531
          %s533 = smul.addr %s51, 4
          %s534 = smul.addr %s533, 64
          %s535 = scalar_lea.hbm %s7, %s534
          %s536 = sshll.u32 %s529, 4
          %s537 = int_to_ptr.vmem [resolvable:$true] %s536
          %542 = dma.hbm_to_vmem [thread:$0]  %s535, 256, %s537, %s526, 64, 64, 4
        $region44: #{tpu_custom_call.1} parent=15 // pred_fallthru
          _
        // Predicated region
        $region45: #{tpu_custom_call.1} parent=15 // pred_check
          %p543 = pneg %p257
        $region46: #{tpu_custom_call.1} parent=15 // pred_check_branch
          %545 = sbr.rel (%p543) target = $region48
        $region47: #{tpu_custom_call.1} parent=15 // pred_region
          %s546 = sand.u32 %s43, 1
          %s547 = scalar_lea.sflag [#allocation15], %s546
          %s548 = sand.u32 %s247, 1
          %s549 = scalar_lea.vmem [#allocation14], %s548
          %s551 = ssub.s32 16, 16
          %552 = vsyncadd %s547, %s551
          %s553 = smul.addr %s51, 16
          %s554 = scalar_lea.hbm %s8, %s553
          %s556 = sshll.u32 %s549, 4
          %s557 = int_to_ptr.vmem [resolvable:$true] %s556
          %559 = dma.hbm_to_vmem [thread:$0]  %s554, 16, %s557, %s547
        $region48: #{tpu_custom_call.1} parent=15 // pred_fallthru
          _
        // Predicated region
        $region49: #{tpu_custom_call.1} parent=15 // pred_check
          %p560 = pneg %p283
        $region50: #{tpu_custom_call.1} parent=15 // pred_check_branch
          %562 = sbr.rel (%p560) target = $region52
        $region51: #{tpu_custom_call.1} parent=15 // pred_region
          %s563 = sand.u32 %s43, 1
          %s564 = scalar_lea.sflag [#allocation15], %s563
          %s565 = sand.u32 %s273, 1
          %s566 = smul.addr %s565, 32
          %s567 = scalar_lea.vmem [#allocation16], %s566
          %s569 = ssub.s32 512, 512
          %570 = vsyncadd %s564, %s569
          %s571 = smul.addr %s51, 8
          %s572 = smul.addr %s571, 64
          %s573 = scalar_lea.hbm %s9, %s572
          %s574 = sshll.u32 %s567, 4
          %s575 = int_to_ptr.vmem [resolvable:$true] %s574
          %580 = dma.hbm_to_vmem [thread:$0]  %s573, 512, %s575, %s564, 64, 64, 4
        $region52: #{tpu_custom_call.1} parent=15 // pred_fallthru
          _
        // Predicated region
        $region53: #{tpu_custom_call.1} parent=15 // pred_check
          %p581 = pneg %p309
        $region54: #{tpu_custom_call.1} parent=15 // pred_check_branch
          %583 = sbr.rel (%p581) target = $region56
        $region55: #{tpu_custom_call.1} parent=15 // pred_region
          %s584 = sand.u32 %s43, 1
          %s585 = scalar_lea.sflag [#allocation18], %s584
          %s586 = sand.u32 %s299, 1
          %s587 = scalar_lea.vmem [#allocation17], %s586
          %s589 = ssub.s32 16, 16
          %590 = vsyncadd %s585, %s589
          %s591 = smul.addr %s51, 16
          %s592 = scalar_lea.hbm %s10, %s591
          %s594 = sshll.u32 %s587, 4
          %s595 = int_to_ptr.vmem [resolvable:$true] %s594
          %597 = dma.hbm_to_vmem [thread:$0]  %s592, 16, %s595, %s585
        $region56: #{tpu_custom_call.1} parent=15 // pred_fallthru
          _
        // Predicated region
        $region57: #{tpu_custom_call.1} parent=15 // pred_check
          %p598 = pneg %p335
        $region58: #{tpu_custom_call.1} parent=15 // pred_check_branch
          %600 = sbr.rel (%p598) target = $region60
        $region59: #{tpu_custom_call.1} parent=15 // pred_region
          %s601 = sand.u32 %s43, 1
          %s602 = scalar_lea.sflag [#allocation18], %s601
          %s603 = sand.u32 %s325, 1
          %s604 = scalar_lea.vmem [#allocation19], %s603
          %s606 = ssub.s32 16, 16
          %607 = vsyncadd %s602, %s606
          %s608 = smul.addr %s51, 16
          %s609 = scalar_lea.hbm %s11, %s608
          %s611 = sshll.u32 %s604, 4
          %s612 = int_to_ptr.vmem [resolvable:$true] %s611
          %614 = dma.hbm_to_vmem [thread:$0]  %s609, 16, %s612, %s602
        $region60: #{tpu_custom_call.1} parent=15 // pred_fallthru
          _
        // Predicated region
        $region61: #{tpu_custom_call.1} parent=15 // pred_check
          %p615 = pneg %p361
        $region62: #{tpu_custom_call.1} parent=15 // pred_check_branch
          %617 = sbr.rel (%p615) target = $region64
        $region63: #{tpu_custom_call.1} parent=15 // pred_region
          %s618 = sand.u32 %s351, 1
          %s619 = scalar_lea.sflag [#allocation21], %s618
          %s620 = sand.u32 %s351, 1
          %s621 = scalar_lea.vmem [#allocation20], %s620
          %s623 = ssub.s32 16, 16
          %624 = vsyncadd %s619, %s623
          %s625 = smul.addr %s51, 16
          %s626 = scalar_lea.hbm %s12, %s625
          %s628 = sshll.u32 %s621, 4
          %s629 = int_to_ptr.vmem [resolvable:$true] %s628
          %631 = dma.hbm_to_vmem [thread:$0]  %s626, 16, %s629, %s619
        $region64: #{tpu_custom_call.1} parent=15 // pred_fallthru
          _
      $region16: #{tpu_custom_call.1} parent=5 // pred_fallthru
        _
      %p632 = scmp.le.s32.totalorder 1, %s43
      %p633 = scmp.lt.s32.totalorder %s43, 5
      %p634 = pnand %p632, %p633
      %p635 = pneg %p634
      // Predicated region
      $region65: #{tpu_custom_call.1} parent=5 // pred_check
        _
      $region66: #{tpu_custom_call.1} parent=5 // pred_check_branch
        %637 = sbr.rel (%p634) target = $region68
      $region67: #{tpu_custom_call.1} parent=5 // pred_region
        %s638 = ssub.s32 %s43, 1
        %s639 = sand.u32 %s68, 1
        %s640 = scalar_lea.sflag [#allocation3], %s639
        %s641 = sand.u32 %s68, 1
        %s642 = smul.addr %s641, 16
        %s643 = scalar_lea.vmem [#allocation2], %s642
        // Predicated region
        $region69: #{tpu_custom_call.1} parent=67 // pred_check
          %p644 = pneg %p81
        $region70: #{tpu_custom_call.1} parent=67 // pred_check_branch
          %646 = sbr.rel (%p644) target = $region72
        $region71: #{tpu_custom_call.1} parent=67 // pred_region
          %647 = dma.done %s640, 256
        $region72: #{tpu_custom_call.1} parent=67 // pred_fallthru
          _
        %s648 = sand.u32 %s48, 1
        %s649 = scalar_lea.sflag [#allocation6], %s648
        %s650 = sand.u32 %s94, 1
        %s651 = scalar_lea.vmem [#allocation5], %s650
        // Predicated region
        $region73: #{tpu_custom_call.1} parent=67 // pred_check
          %p652 = pneg %p107
        $region74: #{tpu_custom_call.1} parent=67 // pred_check_branch
          %654 = sbr.rel (%p652) target = $region76
        $region75: #{tpu_custom_call.1} parent=67 // pred_region
          %655 = dma.done %s649, 16
        $region76: #{tpu_custom_call.1} parent=67 // pred_fallthru
          _
        %s656 = sand.u32 %s48, 1
        %s657 = scalar_lea.sflag [#allocation6], %s656
        %s658 = sand.u32 %s120, 1
        %s659 = smul.addr %s658, 16
        %s660 = scalar_lea.vmem [#allocation7], %s659
        // Predicated region
        $region77: #{tpu_custom_call.1} parent=67 // pred_check
          %p661 = pneg %p133
        $region78: #{tpu_custom_call.1} parent=67 // pred_check_branch
          %663 = sbr.rel (%p661) target = $region80
        $region79: #{tpu_custom_call.1} parent=67 // pred_region
          %664 = dma.done %s657, 256
        $region80: #{tpu_custom_call.1} parent=67 // pred_fallthru
          _
        %s665 = sand.u32 %s48, 1
        %s666 = scalar_lea.sflag [#allocation9], %s665
        %s667 = sand.u32 %s146, 1
        %s668 = scalar_lea.vmem [#allocation8], %s667
        // Predicated region
        $region81: #{tpu_custom_call.1} parent=67 // pred_check
          %p669 = pneg %p159
        $region82: #{tpu_custom_call.1} parent=67 // pred_check_branch
          %671 = sbr.rel (%p669) target = $region84
        $region83: #{tpu_custom_call.1} parent=67 // pred_region
          %672 = dma.done %s666, 16
        $region84: #{tpu_custom_call.1} parent=67 // pred_fallthru
          _
        %s673 = sand.u32 %s48, 1
        %s674 = scalar_lea.sflag [#allocation9], %s673
        %s675 = sand.u32 %s172, 1
        %s676 = scalar_lea.vmem [#allocation10], %s675
        // Predicated region
        $region85: #{tpu_custom_call.1} parent=67 // pred_check
          %p677 = pneg %p185
        $region86: #{tpu_custom_call.1} parent=67 // pred_check_branch
          %679 = sbr.rel (%p677) target = $region88
        $region87: #{tpu_custom_call.1} parent=67 // pred_region
          %680 = dma.done %s674, 16
        $region88: #{tpu_custom_call.1} parent=67 // pred_fallthru
          _
        %s681 = sand.u32 %s48, 1
        %s682 = scalar_lea.sflag [#allocation12], %s681
        %s683 = sand.u32 %s198, 1
        %s684 = scalar_lea.vmem [#allocation11], %s683
        // Predicated region
        $region89: #{tpu_custom_call.1} parent=67 // pred_check
          %p685 = pneg %p211
        $region90: #{tpu_custom_call.1} parent=67 // pred_check_branch
          %687 = sbr.rel (%p685) target = $region92
        $region91: #{tpu_custom_call.1} parent=67 // pred_region
          %688 = dma.done %s682, 16
        $region92: #{tpu_custom_call.1} parent=67 // pred_fallthru
          _
        %s689 = sand.u32 %s48, 1
        %s690 = scalar_lea.sflag [#allocation12], %s689
        %s691 = sand.u32 %s224, 1
        %s692 = smul.addr %s691, 16
        %s693 = scalar_lea.vmem [#allocation13], %s692
        // Predicated region
        $region93: #{tpu_custom_call.1} parent=67 // pred_check
          %p694 = pneg %p237
        $region94: #{tpu_custom_call.1} parent=67 // pred_check_branch
          %696 = sbr.rel (%p694) target = $region96
        $region95: #{tpu_custom_call.1} parent=67 // pred_region
          %697 = dma.done %s690, 256
        $region96: #{tpu_custom_call.1} parent=67 // pred_fallthru
          _
        %s698 = sand.u32 %s48, 1
        %s699 = scalar_lea.sflag [#allocation15], %s698
        %s700 = sand.u32 %s250, 1
        %s701 = scalar_lea.vmem [#allocation14], %s700
        // Predicated region
        $region97: #{tpu_custom_call.1} parent=67 // pred_check
          %p702 = pneg %p263
        $region98: #{tpu_custom_call.1} parent=67 // pred_check_branch
          %704 = sbr.rel (%p702) target = $region100
        $region99: #{tpu_custom_call.1} parent=67 // pred_region
          %705 = dma.done %s699, 16
        $region100: #{tpu_custom_call.1} parent=67 // pred_fallthru
          _
        %s706 = sand.u32 %s48, 1
        %s707 = scalar_lea.sflag [#allocation15], %s706
        %s708 = sand.u32 %s276, 1
        %s709 = smul.addr %s708, 32
        %s710 = scalar_lea.vmem [#allocation16], %s709
        // Predicated region
        $region101: #{tpu_custom_call.1} parent=67 // pred_check
          %p711 = pneg %p289
        $region102: #{tpu_custom_call.1} parent=67 // pred_check_branch
          %713 = sbr.rel (%p711) target = $region104
        $region103: #{tpu_custom_call.1} parent=67 // pred_region
          %714 = dma.done %s707, 512
        $region104: #{tpu_custom_call.1} parent=67 // pred_fallthru
          _
        %s715 = sand.u32 %s48, 1
        %s716 = scalar_lea.sflag [#allocation18], %s715
        %s717 = sand.u32 %s302, 1
        %s718 = scalar_lea.vmem [#allocation17], %s717
        // Predicated region
        $region105: #{tpu_custom_call.1} parent=67 // pred_check
          %p719 = pneg %p315
        $region106: #{tpu_custom_call.1} parent=67 // pred_check_branch
          %721 = sbr.rel (%p719) target = $region108
        $region107: #{tpu_custom_call.1} parent=67 // pred_region
          %722 = dma.done %s716, 16
        $region108: #{tpu_custom_call.1} parent=67 // pred_fallthru
          _
        %s723 = sand.u32 %s48, 1
        %s724 = scalar_lea.sflag [#allocation18], %s723
        %s725 = sand.u32 %s328, 1
        %s726 = scalar_lea.vmem [#allocation19], %s725
        // Predicated region
        $region109: #{tpu_custom_call.1} parent=67 // pred_check
          %p727 = pneg %p341
        $region110: #{tpu_custom_call.1} parent=67 // pred_check_branch
          %729 = sbr.rel (%p727) target = $region112
        $region111: #{tpu_custom_call.1} parent=67 // pred_region
          %730 = dma.done %s724, 16
        $region112: #{tpu_custom_call.1} parent=67 // pred_fallthru
          _
        %s731 = sand.u32 %s354, 1
        %s732 = scalar_lea.sflag [#allocation21], %s731
        %s733 = sand.u32 %s354, 1
        %s734 = scalar_lea.vmem [#allocation20], %s733
        // Predicated region
        $region113: #{tpu_custom_call.1} parent=67 // pred_check
          %p735 = pneg %p367
        $region114: #{tpu_custom_call.1} parent=67 // pred_check_branch
          %737 = sbr.rel (%p735) target = $region116
        $region115: #{tpu_custom_call.1} parent=67 // pred_region
          %738 = dma.done %s732, 16
        $region116: #{tpu_custom_call.1} parent=67 // pred_fallthru
          _
        %s739 = sand.u32 %s68, 1
        %s740 = scalar_lea.sflag [#allocation3], %s739
        %s741 = sand.u32 %s68, 1
        %s742 = smul.addr %s741, 16
        %s743 = scalar_lea.vmem [#allocation2], %s742
        %p744 = pneg %p81
        %p745 = pneg %p78
        %s746 = sand.u32 %s48, 1
        %s747 = scalar_lea.sflag [#allocation6], %s746
        %s748 = sand.u32 %s94, 1
        %s749 = scalar_lea.vmem [#allocation5], %s748
        %p750 = pneg %p107
        %p751 = pneg %p104
        %s752 = sand.u32 %s48, 1
        %s753 = scalar_lea.sflag [#allocation6], %s752
        %s754 = sand.u32 %s120, 1
        %s755 = smul.addr %s754, 16
        %s756 = scalar_lea.vmem [#allocation7], %s755
        %p757 = pneg %p133
        %p758 = pneg %p130
        %s759 = sand.u32 %s48, 1
        %s760 = scalar_lea.sflag [#allocation9], %s759
        %s761 = sand.u32 %s146, 1
        %s762 = scalar_lea.vmem [#allocation8], %s761
        %p763 = pneg %p159
        %p764 = pneg %p156
        %s765 = sand.u32 %s48, 1
        %s766 = scalar_lea.sflag [#allocation9], %s765
        %s767 = sand.u32 %s172, 1
        %s768 = scalar_lea.vmem [#allocation10], %s767
        %p769 = pneg %p185
        %p770 = pneg %p182
        %s771 = sand.u32 %s48, 1
        %s772 = scalar_lea.sflag [#allocation12], %s771
        %s773 = sand.u32 %s198, 1
        %s774 = scalar_lea.vmem [#allocation11], %s773
        %p775 = pneg %p211
        %p776 = pneg %p208
        %s777 = sand.u32 %s48, 1
        %s778 = scalar_lea.sflag [#allocation12], %s777
        %s779 = sand.u32 %s224, 1
        %s780 = smul.addr %s779, 16
        %s781 = scalar_lea.vmem [#allocation13], %s780
        %p782 = pneg %p237
        %p783 = pneg %p234
        %s784 = sand.u32 %s48, 1
        %s785 = scalar_lea.sflag [#allocation15], %s784
        %s786 = sand.u32 %s250, 1
        %s787 = scalar_lea.vmem [#allocation14], %s786
        %p788 = pneg %p263
        %p789 = pneg %p260
        %s790 = sand.u32 %s48, 1
        %s791 = scalar_lea.sflag [#allocation15], %s790
        %s792 = sand.u32 %s276, 1
        %s793 = smul.addr %s792, 32
        %s794 = scalar_lea.vmem [#allocation16], %s793
        %p795 = pneg %p289
        %p796 = pneg %p286
        %s797 = sand.u32 %s48, 1
        %s798 = scalar_lea.sflag [#allocation18], %s797
        %s799 = sand.u32 %s302, 1
        %s800 = scalar_lea.vmem [#allocation17], %s799
        %p801 = pneg %p315
        %p802 = pneg %p312
        %s803 = sand.u32 %s48, 1
        %s804 = scalar_lea.sflag [#allocation18], %s803
        %s805 = sand.u32 %s328, 1
        %s806 = scalar_lea.vmem [#allocation19], %s805
        %p807 = pneg %p341
        %p808 = pneg %p338
        %s809 = sand.u32 %s354, 1
        %s810 = scalar_lea.sflag [#allocation21], %s809
        %s811 = sand.u32 %s354, 1
        %s812 = scalar_lea.vmem [#allocation20], %s811
        %p813 = pneg %p367
        %p814 = pneg %p364
        %p815 = pneg %p393
        %p816 = pneg %p390
        %s817 = sand.u32 %s380, 1
        %s818 = scalar_lea.sflag [#allocation4], %s817
        %s819 = sand.u32 %s380, 1
        %s820 = smul.addr %s819, 8
        %s821 = scalar_lea.vmem [#allocation22], %s820
        %p823 = scmp.eq.s32.totalorder %s53, 0
        // Predicated region
        $region117: #{tpu_custom_call.1} parent=67 // pred_check
          %p824 = pneg %p823
        $region118: #{tpu_custom_call.1} parent=67 // pred_check_branch
          %826 = sbr.rel (%p824) target = $region120
        $region119: #{tpu_custom_call.1} parent=67 // pred_region
          %s827 = smul.u32 %s52, 8
          $region121: #{tpu_custom_call.1} parent=119
            #allocation23 [shape = 's32[1]{0}', space=sflag, size = 0x4, scoped, tag = 'scoped memory for tpu_custom_call.1']
            %s828 = smul.addr %s827, 16
            %s829 = scalar_lea.hbm %s0, %s828
            // Predicated region
            $region122: #{tpu_custom_call.1} parent=121 // pred_check
              _
            $region123: #{tpu_custom_call.1} parent=121 // pred_check_branch
              %831 = sbr.rel target = $region125
            $region124: #{tpu_custom_call.1} parent=121 // pred_region
              %832 = sst [smem:[#allocation26]] [#allocation25]
              %833 = sst [smem:[#allocation27]] [#allocation24]
            $region125: #{tpu_custom_call.1} parent=121 // pred_fallthru
              _
            %835 = shalt.err (0)
            %s837 = sshll.u32 %s821, 4
            %s838 = int_to_ptr.vmem [resolvable:$true] %s837
            %840 = dma.hbm_to_vmem [thread:$0]  %s829, 128, %s838, [#allocation23]
            %s841 = smul.u32 8, 1
            %s842 = sshll.u32 %s841, 4
            %843 = dma.done [#allocation23], %s842
        $region120: #{tpu_custom_call.1} parent=67 // pred_fallthru
          _
        %v844 = vld [vmem:[%s821] sm:$0xff]
        %v845 = vpack.c.bf16 %v844, %v844
        %v846 = vld [vmem:[%s643] sm:$0xf]
        %v847 = vld [vmem:[%s643 + $0x4] sm:$0xf]
        %v848 = vld [vmem:[%s643 + $0x8] sm:$0xf]
        %v849 = vld [vmem:[%s643 + $0xc] sm:$0xf]
        %v850 = vld [vmem:[%s651] sm:$0x1]
        %v852 = vlaneseq
        %v853 = vshrl.u32 %v852, 7
        %v854 = vsub.s32 0, %v853
        %v855 = vrot.slane %v850, %v854
        %v861 = vunpack.c.l.b16 %v846
        %v862 = vunpack.c.l.b16 %v847
        %v863 = vunpack.c.l.b16 %v848
        %v864 = vunpack.c.l.b16 %v849
        %v865 = vpack.c.b16 %v862, %v861
        %v866 = vpack.c.b16 %v864, %v863
        %vm869 = vcmask 261120
        %v871 = vsel %vm869, %v845, 0
        %873 = vmatprep.subr.bf16.mxu0 0
        %874 = vmatpush1.bf16.msra.mxu0 %v865
        %875 = vmatprep.subr.bf16.mxu0 0
        %876 = vmatpush1.bf16.msra.mxu0 %v866
        %877 = vmatprep.subr.bf16.mxu0 0
        %878 = vmatpush1.bf16.msra.mxu0 0
        %879 = vmatprep.subr.bf16.mxu0 0
        %880 = vmatpush1.bf16.msra.mxu0 0
        %881 = vmatprep.subr.bf16.mxu0 0
        %882 = vmatpush1.bf16.msra.mxu0 0
        %883 = vmatprep.subr.bf16.mxu0 0
        %884 = vmatpush1.bf16.msra.mxu0 0
        %885 = vmatprep.subr.bf16.mxu0 0
        %886 = vmatpush1.bf16.msra.mxu0 0
        %887 = vmatprep.subr.bf16.mxu0 0
        %888 = vmatpush1.bf16.msra.mxu0 0
        %889 = vmatprep.subr.bf16.mxu0 0
        %890 = vmatpush1.bf16.msra.mxu0 0
        %891 = vmatprep.subr.bf16.mxu0 0
        %892 = vmatpush1.bf16.msra.mxu0 0
        %893 = vmatprep.subr.bf16.mxu0 0
        %894 = vmatpush1.bf16.msra.mxu0 0
        %895 = vmatprep.subr.bf16.mxu0 0
        %896 = vmatpush1.bf16.msra.mxu0 0
        %897 = vmatprep.subr.bf16.mxu0 0
        %898 = vmatpush1.bf16.msra.mxu0 0
        %899 = vmatprep.subr.bf16.mxu0 0
        %900 = vmatpush1.bf16.msra.mxu0 0
        %901 = vmatprep.subr.bf16.mxu0 0
        %902 = vmatpush1.bf16.msra.mxu0 0
        %903 = vmatprep.subr.bf16.mxu0 0
        %904 = vmatpush1.bf16.msra.mxu0 0
        %905 = vmatprep.mubr.bf16.mxu0 0
        %906 = vmatmul.mubr.bf16.gmra.mrb[0].mxu0 %v871
        %v907 = vpop.f32.mrb[0].mxu0
        %v908 = vadd.f32 %v855, %v907
        %v909 = vpop.f32.mrb[0].mxu0
        %v910 = vpop.f32.mrb[0].mxu0
        %v911 = vpop.f32.mrb[0].mxu0
        %912 = vdwg.mxu0
        %v913 = vlaneseq
        %v914 = vshrl.u32 %v913, 7
        %v915 = vlaneseq
        %v916 = vand.u32 %v915, 127
        %vm917 = vcmp.le.s32.totalorder %v916, %v914
        %v918 = vpack.c.bf16 %v908, %v908
        %920 = vrot.lane.b32.xlu0 %v918, 96
        %v921 = vpop.permute.xlu0 %920
        %vm922 = vcmask 64512
        %v924 = vsel %vm922, %v918, 0
        %v927 = vsel %vm922, %v921, 0
        %929 = vmatprep.subr.bf16.mxu0 0
        %930 = vmatpush1.bf16.xpose.msra.mxu0 %v927
        %931 = vmatprep.subr.bf16.mxu0 0
        %932 = vmatpush1.bf16.xpose.msra.mxu0 0
        %933 = vmatprep.subr.bf16.mxu0 0
        %934 = vmatpush1.bf16.xpose.msra.mxu0 0
        %935 = vmatprep.subr.bf16.mxu0 0
        %936 = vmatpush1.bf16.xpose.msra.mxu0 0
        %937 = vmatprep.subr.bf16.mxu0 0
        %938 = vmatpush1.bf16.xpose.msra.mxu0 0
        %939 = vmatprep.subr.bf16.mxu0 0
        %940 = vmatpush1.bf16.xpose.msra.mxu0 0
        %941 = vmatprep.subr.bf16.mxu0 0
        %942 = vmatpush1.bf16.xpose.msra.mxu0 0
        %943 = vmatprep.subr.bf16.mxu0 0
        %944 = vmatpush1.bf16.xpose.msra.mxu0 0
        %945 = vmatprep.subr.bf16.mxu0 0
        %946 = vmatpush1.bf16.xpose.msra.mxu0 0
        %947 = vmatprep.subr.bf16.mxu0 0
        %948 = vmatpush1.bf16.xpose.msra.mxu0 0
        %949 = vmatprep.subr.bf16.mxu0 0
        %950 = vmatpush1.bf16.xpose.msra.mxu0 0
        %951 = vmatprep.subr.bf16.mxu0 0
        %952 = vmatpush1.bf16.xpose.msra.mxu0 0
        %953 = vmatprep.subr.bf16.mxu0 0
        %954 = vmatpush1.bf16.xpose.msra.mxu0 0
        %955 = vmatprep.subr.bf16.mxu0 0
        %956 = vmatpush1.bf16.xpose.msra.mxu0 0
        %957 = vmatprep.subr.bf16.mxu0 0
        %958 = vmatpush1.bf16.xpose.msra.mxu0 0
        %959 = vmatprep.subr.bf16.mxu0 0
        %960 = vmatpush1.bf16.xpose.msra.mxu0 0
        %961 = vmatprep.mubr.bf16.mxu0 0
        %962 = vmatmul.mubr.bf16.gmra.mrb[0].mxu0 %v924
        %v963 = vpop.f32.mrb[0].mxu0
        %v964 = vadd.f32 0.0, %v963
        %v965 = vpop.f32.mrb[0].mxu0
        %v966 = vpop.f32.mrb[0].mxu0
        %v967 = vpop.f32.mrb[0].mxu0
        %968 = vdwg.mxu0
        %v969 = vsel %vm917, %v964, -1e+30
        %v970 = vsel %vm922, %v969, -inf
        %971 = vmax.xlane.f32.xlu0 %v970
        %v972 = vpop.xlane.xlu0 %971
        %v973 = vsub.f32 %v969, %v972
        %v974 = vmul.f32 %v973, 1.442695
        %v975 = vpow.pop %v974
        %v976 = vsel %vm922, %v975, 0.0
        %977 = vadd.xlane.f32.xlu0 %v976
        %v978 = vpop.xlane.xlu0 %977
        %v979 = vrcp.pop %v978
        %v980 = vmul.f32 %v975, %v979
        %v981 = vpack.c.bf16 %v980, %v980
        %982 = vrot.lane.b32.xlu0 %v918, 64
        %v983 = vpop.permute.xlu0 %982
        %v985 = vsel %vm922, %v981, 0
        %vm987 = vcmask 1043456
        %v989 = vsel %vm987, %v983, 0
        %991 = vmatprep.subr.bf16.mxu0 0
        %992 = vmatpush1.bf16.msra.mxu0 %v989
        %993 = vmatprep.subr.bf16.mxu0 0
        %994 = vmatpush1.bf16.msra.mxu0 0
        %995 = vmatprep.subr.bf16.mxu0 0
        %996 = vmatpush1.bf16.msra.mxu0 0
        %997 = vmatprep.subr.bf16.mxu0 0
        %998 = vmatpush1.bf16.msra.mxu0 0
        %999 = vmatprep.subr.bf16.mxu0 0
        %1000 = vmatpush1.bf16.msra.mxu0 0
        %1001 = vmatprep.subr.bf16.mxu0 0
        %1002 = vmatpush1.bf16.msra.mxu0 0
        %1003 = vmatprep.subr.bf16.mxu0 0
        %1004 = vmatpush1.bf16.msra.mxu0 0
        %1005 = vmatprep.subr.bf16.mxu0 0
        %1006 = vmatpush1.bf16.msra.mxu0 0
        %1007 = vmatprep.subr.bf16.mxu0 0
        %1008 = vmatpush1.bf16.msra.mxu0 0
        %1009 = vmatprep.subr.bf16.mxu0 0
        %1010 = vmatpush1.bf16.msra.mxu0 0
        %1011 = vmatprep.subr.bf16.mxu0 0
        %1012 = vmatpush1.bf16.msra.mxu0 0
        %1013 = vmatprep.subr.bf16.mxu0 0
        %1014 = vmatpush1.bf16.msra.mxu0 0
        %1015 = vmatprep.subr.bf16.mxu0 0
        %1016 = vmatpush1.bf16.msra.mxu0 0
        %1017 = vmatprep.subr.bf16.mxu0 0
        %1018 = vmatpush1.bf16.msra.mxu0 0
        %1019 = vmatprep.subr.bf16.mxu0 0
        %1020 = vmatpush1.bf16.msra.mxu0 0
        %1021 = vmatprep.subr.bf16.mxu0 0
        %1022 = vmatpush1.bf16.msra.mxu0 0
        %1023 = vmatprep.mubr.bf16.mxu0 0
        %1024 = vmatmul.mubr.bf16.gmra.mrb[0].mxu0 %v985
        %v1025 = vpop.f32.mrb[0].mxu0
        %v1026 = vadd.f32 0.0, %v1025
        %v1027 = vpop.f32.mrb[0].mxu0
        %v1028 = vpop.f32.mrb[0].mxu0
        %v1029 = vpop.f32.mrb[0].mxu0
        %1030 = vdwg.mxu0
        %1031 = vrot.lane.b32.xlu0 %v918, 120
        %v1032 = vpop.permute.xlu0 %1031
        %1033 = vrot.lane.b32.xlu0 %v918, 88
        %v1034 = vpop.permute.xlu0 %1033
        %v1036 = vsel %vm922, %v1032, 0
        %v1039 = vsel %vm922, %v1034, 0
        %1041 = vmatprep.subr.bf16.mxu0 0
        %1042 = vmatpush1.bf16.xpose.msra.mxu0 %v1039
        %1043 = vmatprep.subr.bf16.mxu0 0
        %1044 = vmatpush1.bf16.xpose.msra.mxu0 0
        %1045 = vmatprep.subr.bf16.mxu0 0
        %1046 = vmatpush1.bf16.xpose.msra.mxu0 0
        %1047 = vmatprep.subr.bf16.mxu0 0
        %1048 = vmatpush1.bf16.xpose.msra.mxu0 0
        %1049 = vmatprep.subr.bf16.mxu0 0
        %1050 = vmatpush1.bf16.xpose.msra.mxu0 0
        %1051 = vmatprep.subr.bf16.mxu0 0
        %1052 = vmatpush1.bf16.xpose.msra.mxu0 0
        %1053 = vmatprep.subr.bf16.mxu0 0
        %1054 = vmatpush1.bf16.xpose.msra.mxu0 0
        %1055 = vmatprep.subr.bf16.mxu0 0
        %1056 = vmatpush1.bf16.xpose.msra.mxu0 0
        %1057 = vmatprep.subr.bf16.mxu0 0
        %1058 = vmatpush1.bf16.xpose.msra.mxu0 0
        %1059 = vmatprep.subr.bf16.mxu0 0
        %1060 = vmatpush1.bf16.xpose.msra.mxu0 0
        %1061 = vmatprep.subr.bf16.mxu0 0
        %1062 = vmatpush1.bf16.xpose.msra.mxu0 0
        %1063 = vmatprep.subr.bf16.mxu0 0
        %1064 = vmatpush1.bf16.xpose.msra.mxu0 0
        %1065 = vmatprep.subr.bf16.mxu0 0
        %1066 = vmatpush1.bf16.xpose.msra.mxu0 0
        %1067 = vmatprep.subr.bf16.mxu0 0
        %1068 = vmatpush1.bf16.xpose.msra.mxu0 0
        %1069 = vmatprep.subr.bf16.mxu0 0
        %1070 = vmatpush1.bf16.xpose.msra.mxu0 0
        %1071 = vmatprep.subr.bf16.mxu0 0
        %1072 = vmatpush1.bf16.xpose.msra.mxu0 0
        %1073 = vmatprep.mubr.bf16.mxu0 0
        %1074 = vmatmul.mubr.bf16.gmra.mrb[0].mxu0 %v1036
        %v1075 = vpop.f32.mrb[0].mxu0
        %v1076 = vadd.f32 0.0, %v1075
        %v1077 = vpop.f32.mrb[0].mxu0
        %v1078 = vpop.f32.mrb[0].mxu0
        %v1079 = vpop.f32.mrb[0].mxu0
        %1080 = vdwg.mxu0
        %v1081 = vsel %vm917, %v1076, -1e+30
        %v1082 = vsel %vm922, %v1081, -inf
        %1083 = vmax.xlane.f32.xlu0 %v1082
        %v1084 = vpop.xlane.xlu0 %1083
        %v1085 = vsub.f32 %v1081, %v1084
        %v1086 = vmul.f32 %v1085, 1.442695
        %v1087 = vpow.pop %v1086
        %v1088 = vsel %vm922, %v1087, 0.0
        %1089 = vadd.xlane.f32.xlu0 %v1088
        %v1090 = vpop.xlane.xlu0 %1089
        %v1091 = vrcp.pop %v1090
        %v1092 = vmul.f32 %v1087, %v1091
        %v1093 = vpack.c.bf16 %v1092, %v1092
        %1094 = vrot.lane.b32.xlu0 %v918, 56
        %v1095 = vpop.permute.xlu0 %1094
        %v1097 = vsel %vm922, %v1093, 0
        %v1100 = vsel %vm987, %v1095, 0
        %1102 = vmatprep.subr.bf16.mxu0 0
        %1103 = vmatpush1.bf16.msra.mxu0 %v1100
        %1104 = vmatprep.subr.bf16.mxu0 0
        %1105 = vmatpush1.bf16.msra.mxu0 0
        %1106 = vmatprep.subr.bf16.mxu0 0
        %1107 = vmatpush1.bf16.msra.mxu0 0
        %1108 = vmatprep.subr.bf16.mxu0 0
        %1109 = vmatpush1.bf16.msra.mxu0 0
        %1110 = vmatprep.subr.bf16.mxu0 0
        %1111 = vmatpush1.bf16.msra.mxu0 0
        %1112 = vmatprep.subr.bf16.mxu0 0
        %1113 = vmatpush1.bf16.msra.mxu0 0
        %1114 = vmatprep.subr.bf16.mxu0 0
        %1115 = vmatpush1.bf16.msra.mxu0 0
        %1116 = vmatprep.subr.bf16.mxu0 0
        %1117 = vmatpush1.bf16.msra.mxu0 0
        %1118 = vmatprep.subr.bf16.mxu0 0
        %1119 = vmatpush1.bf16.msra.mxu0 0
        %1120 = vmatprep.subr.bf16.mxu0 0
        %1121 = vmatpush1.bf16.msra.mxu0 0
        %1122 = vmatprep.subr.bf16.mxu0 0
        %1123 = vmatpush1.bf16.msra.mxu0 0
        %1124 = vmatprep.subr.bf16.mxu0 0
        %1125 = vmatpush1.bf16.msra.mxu0 0
        %1126 = vmatprep.subr.bf16.mxu0 0
        %1127 = vmatpush1.bf16.msra.mxu0 0
        %1128 = vmatprep.subr.bf16.mxu0 0
        %1129 = vmatpush1.bf16.msra.mxu0 0
        %1130 = vmatprep.subr.bf16.mxu0 0
        %1131 = vmatpush1.bf16.msra.mxu0 0
        %1132 = vmatprep.subr.bf16.mxu0 0
        %1133 = vmatpush1.bf16.msra.mxu0 0
        %1134 = vmatprep.mubr.bf16.mxu0 0
        %1135 = vmatmul.mubr.bf16.gmra.mrb[0].mxu0 %v1097
        %v1136 = vpop.f32.mrb[0].mxu0
        %v1137 = vadd.f32 0.0, %v1136
        %v1138 = vpop.f32.mrb[0].mxu0
        %v1139 = vpop.f32.mrb[0].mxu0
        %v1140 = vpop.f32.mrb[0].mxu0
        %1141 = vdwg.mxu0
        %1142 = vrot.lane.b32.xlu0 %v918, 112
        %v1143 = vpop.permute.xlu0 %1142
        %1144 = vrot.lane.b32.xlu0 %v918, 80
        %v1145 = vpop.permute.xlu0 %1144
        %v1147 = vsel %vm922, %v1143, 0
        %v1150 = vsel %vm922, %v1145, 0
        %1152 = vmatprep.subr.bf16.mxu0 0
        %1153 = vmatpush1.bf16.xpose.msra.mxu0 %v1150
        %1154 = vmatprep.subr.bf16.mxu0 0
        %1155 = vmatpush1.bf16.xpose.msra.mxu0 0
        %1156 = vmatprep.subr.bf16.mxu0 0
        %1157 = vmatpush1.bf16.xpose.msra.mxu0 0
        %1158 = vmatprep.subr.bf16.mxu0 0
        %1159 = vmatpush1.bf16.xpose.msra.mxu0 0
        %1160 = vmatprep.subr.bf16.mxu0 0
        %1161 = vmatpush1.bf16.xpose.msra.mxu0 0
        %1162 = vmatprep.subr.bf16.mxu0 0
        %1163 = vmatpush1.bf16.xpose.msra.mxu0 0
        %1164 = vmatprep.subr.bf16.mxu0 0
        %1165 = vmatpush1.bf16.xpose.msra.mxu0 0
        %1166 = vmatprep.subr.bf16.mxu0 0
        %1167 = vmatpush1.bf16.xpose.msra.mxu0 0
        %1168 = vmatprep.subr.bf16.mxu0 0
        %1169 = vmatpush1.bf16.xpose.msra.mxu0 0
        %1170 = vmatprep.subr.bf16.mxu0 0
        %1171 = vmatpush1.bf16.xpose.msra.mxu0 0
        %1172 = vmatprep.subr.bf16.mxu0 0
        %1173 = vmatpush1.bf16.xpose.msra.mxu0 0
        %1174 = vmatprep.subr.bf16.mxu0 0
        %1175 = vmatpush1.bf16.xpose.msra.mxu0 0
        %1176 = vmatprep.subr.bf16.mxu0 0
        %1177 = vmatpush1.bf16.xpose.msra.mxu0 0
        %1178 = vmatprep.subr.bf16.mxu0 0
        %1179 = vmatpush1.bf16.xpose.msra.mxu0 0
        %1180 = vmatprep.subr.bf16.mxu0 0
        %1181 = vmatpush1.bf16.xpose.msra.mxu0 0
        %1182 = vmatprep.subr.bf16.mxu0 0
        %1183 = vmatpush1.bf16.xpose.msra.mxu0 0
        %1184 = vmatprep.mubr.bf16.mxu0 0
        %1185 = vmatmul.mubr.bf16.gmra.mrb[0].mxu0 %v1147
        %v1186 = vpop.f32.mrb[0].mxu0
        %v1187 = vadd.f32 0.0, %v1186
        %v1188 = vpop.f32.mrb[0].mxu0
        %v1189 = vpop.f32.mrb[0].mxu0
        %v1190 = vpop.f32.mrb[0].mxu0
        %1191 = vdwg.mxu0
        %v1192 = vsel %vm917, %v1187, -1e+30
        %v1193 = vsel %vm922, %v1192, -inf
        %1194 = vmax.xlane.f32.xlu0 %v1193
        %v1195 = vpop.xlane.xlu0 %1194
        %v1196 = vsub.f32 %v1192, %v1195
        %v1197 = vmul.f32 %v1196, 1.442695
        %v1198 = vpow.pop %v1197
        %v1199 = vsel %vm922, %v1198, 0.0
        %1200 = vadd.xlane.f32.xlu0 %v1199
        %v1201 = vpop.xlane.xlu0 %1200
        %v1202 = vrcp.pop %v1201
        %v1203 = vmul.f32 %v1198, %v1202
        %v1204 = vpack.c.bf16 %v1203, %v1203
        %1205 = vrot.lane.b32.xlu0 %v918, 48
        %v1206 = vpop.permute.xlu0 %1205
        %v1208 = vsel %vm922, %v1204, 0
        %v1211 = vsel %vm987, %v1206, 0
        %1213 = vmatprep.subr.bf16.mxu0 0
        %1214 = vmatpush1.bf16.msra.mxu0 %v1211
        %1215 = vmatprep.subr.bf16.mxu0 0
        %1216 = vmatpush1.bf16.msra.mxu0 0
        %1217 = vmatprep.subr.bf16.mxu0 0
        %1218 = vmatpush1.bf16.msra.mxu0 0
        %1219 = vmatprep.subr.bf16.mxu0 0
        %1220 = vmatpush1.bf16.msra.mxu0 0
        %1221 = vmatprep.subr.bf16.mxu0 0
        %1222 = vmatpush1.bf16.msra.mxu0 0
        %1223 = vmatprep.subr.bf16.mxu0 0
        %1224 = vmatpush1.bf16.msra.mxu0 0
        %1225 = vmatprep.subr.bf16.mxu0 0
        %1226 = vmatpush1.bf16.msra.mxu0 0
        %1227 = vmatprep.subr.bf16.mxu0 0
        %1228 = vmatpush1.bf16.msra.mxu0 0
        %1229 = vmatprep.subr.bf16.mxu0 0
        %1230 = vmatpush1.bf16.msra.mxu0 0
        %1231 = vmatprep.subr.bf16.mxu0 0
        %1232 = vmatpush1.bf16.msra.mxu0 0
        %1233 = vmatprep.subr.bf16.mxu0 0
        %1234 = vmatpush1.bf16.msra.mxu0 0
        %1235 = vmatprep.subr.bf16.mxu0 0
        %1236 = vmatpush1.bf16.msra.mxu0 0
        %1237 = vmatprep.subr.bf16.mxu0 0
        %1238 = vmatpush1.bf16.msra.mxu0 0
        %1239 = vmatprep.subr.bf16.mxu0 0
        %1240 = vmatpush1.bf16.msra.mxu0 0
        %1241 = vmatprep.subr.bf16.mxu0 0
        %1242 = vmatpush1.bf16.msra.mxu0 0
        %1243 = vmatprep.subr.bf16.mxu0 0
        %1244 = vmatpush1.bf16.msra.mxu0 0
        %1245 = vmatprep.mubr.bf16.mxu0 0
        %1246 = vmatmul.mubr.bf16.gmra.mrb[0].mxu0 %v1208
        %v1247 = vpop.f32.mrb[0].mxu0
        %v1248 = vadd.f32 0.0, %v1247
        %v1249 = vpop.f32.mrb[0].mxu0
        %v1250 = vpop.f32.mrb[0].mxu0
        %v1251 = vpop.f32.mrb[0].mxu0
        %1252 = vdwg.mxu0
        %1253 = vrot.lane.b32.xlu0 %v918, 104
        %v1254 = vpop.permute.xlu0 %1253
        %1255 = vrot.lane.b32.xlu0 %v918, 72
        %v1256 = vpop.permute.xlu0 %1255
        %v1258 = vsel %vm922, %v1254, 0
        %v1261 = vsel %vm922, %v1256, 0
        %1263 = vmatprep.subr.bf16.mxu0 0
        %1264 = vmatpush1.bf16.xpose.msra.mxu0 %v1261
        %1265 = vmatprep.subr.bf16.mxu0 0
        %1266 = vmatpush1.bf16.xpose.msra.mxu0 0
        %1267 = vmatprep.subr.bf16.mxu0 0
        %1268 = vmatpush1.bf16.xpose.msra.mxu0 0
        %1269 = vmatprep.subr.bf16.mxu0 0
        %1270 = vmatpush1.bf16.xpose.msra.mxu0 0
        %1271 = vmatprep.subr.bf16.mxu0 0
        %1272 = vmatpush1.bf16.xpose.msra.mxu0 0
        %1273 = vmatprep.subr.bf16.mxu0 0
        %1274 = vmatpush1.bf16.xpose.msra.mxu0 0
        %1275 = vmatprep.subr.bf16.mxu0 0
        %1276 = vmatpush1.bf16.xpose.msra.mxu0 0
        %1277 = vmatprep.subr.bf16.mxu0 0
        %1278 = vmatpush1.bf16.xpose.msra.mxu0 0
        %1279 = vmatprep.subr.bf16.mxu0 0
        %1280 = vmatpush1.bf16.xpose.msra.mxu0 0
        %1281 = vmatprep.subr.bf16.mxu0 0
        %1282 = vmatpush1.bf16.xpose.msra.mxu0 0
        %1283 = vmatprep.subr.bf16.mxu0 0
        %1284 = vmatpush1.bf16.xpose.msra.mxu0 0
        %1285 = vmatprep.subr.bf16.mxu0 0
        %1286 = vmatpush1.bf16.xpose.msra.mxu0 0
        %1287 = vmatprep.subr.bf16.mxu0 0
        %1288 = vmatpush1.bf16.xpose.msra.mxu0 0
        %1289 = vmatprep.subr.bf16.mxu0 0
        %1290 = vmatpush1.bf16.xpose.msra.mxu0 0
        %1291 = vmatprep.subr.bf16.mxu0 0
        %1292 = vmatpush1.bf16.xpose.msra.mxu0 0
        %1293 = vmatprep.subr.bf16.mxu0 0
        %1294 = vmatpush1.bf16.xpose.msra.mxu0 0
        %1295 = vmatprep.mubr.bf16.mxu0 0
        %1296 = vmatmul.mubr.bf16.gmra.mrb[0].mxu0 %v1258
        %v1297 = vpop.f32.mrb[0].mxu0
        %v1298 = vadd.f32 0.0, %v1297
        %v1299 = vpop.f32.mrb[0].mxu0
        %v1300 = vpop.f32.mrb[0].mxu0
        %v1301 = vpop.f32.mrb[0].mxu0
        %1302 = vdwg.mxu0
        %v1303 = vsel %vm917, %v1298, -1e+30
        %v1304 = vsel %vm922, %v1303, -inf
        %1305 = vmax.xlane.f32.xlu0 %v1304
        %v1306 = vpop.xlane.xlu0 %1305
        %v1307 = vsub.f32 %v1303, %v1306
        %v1308 = vmul.f32 %v1307, 1.442695
        %v1309 = vpow.pop %v1308
        %v1310 = vsel %vm922, %v1309, 0.0
        %1311 = vadd.xlane.f32.xlu0 %v1310
        %v1312 = vpop.xlane.xlu0 %1311
        %v1313 = vrcp.pop %v1312
        %v1314 = vmul.f32 %v1309, %v1313
        %v1315 = vpack.c.bf16 %v1314, %v1314
        %1316 = vrot.lane.b32.xlu0 %v918, 40
        %v1317 = vpop.permute.xlu0 %1316
        %v1319 = vsel %vm922, %v1315, 0
        %v1322 = vsel %vm987, %v1317, 0
        %1324 = vmatprep.subr.bf16.mxu0 0
        %1325 = vmatpush1.bf16.msra.mxu0 %v1322
        %1326 = vmatprep.subr.bf16.mxu0 0
        %1327 = vmatpush1.bf16.msra.mxu0 0
        %1328 = vmatprep.subr.bf16.mxu0 0
        %1329 = vmatpush1.bf16.msra.mxu0 0
        %1330 = vmatprep.subr.bf16.mxu0 0
        %1331 = vmatpush1.bf16.msra.mxu0 0
        %1332 = vmatprep.subr.bf16.mxu0 0
        %1333 = vmatpush1.bf16.msra.mxu0 0
        %1334 = vmatprep.subr.bf16.mxu0 0
        %1335 = vmatpush1.bf16.msra.mxu0 0
        %1336 = vmatprep.subr.bf16.mxu0 0
        %1337 = vmatpush1.bf16.msra.mxu0 0
        %1338 = vmatprep.subr.bf16.mxu0 0
        %1339 = vmatpush1.bf16.msra.mxu0 0
        %1340 = vmatprep.subr.bf16.mxu0 0
        %1341 = vmatpush1.bf16.msra.mxu0 0
        %1342 = vmatprep.subr.bf16.mxu0 0
        %1343 = vmatpush1.bf16.msra.mxu0 0
        %1344 = vmatprep.subr.bf16.mxu0 0
        %1345 = vmatpush1.bf16.msra.mxu0 0
        %1346 = vmatprep.subr.bf16.mxu0 0
        %1347 = vmatpush1.bf16.msra.mxu0 0
        %1348 = vmatprep.subr.bf16.mxu0 0
        %1349 = vmatpush1.bf16.msra.mxu0 0
        %1350 = vmatprep.subr.bf16.mxu0 0
        %1351 = vmatpush1.bf16.msra.mxu0 0
        %1352 = vmatprep.subr.bf16.mxu0 0
        %1353 = vmatpush1.bf16.msra.mxu0 0
        %1354 = vmatprep.subr.bf16.mxu0 0
        %1355 = vmatpush1.bf16.msra.mxu0 0
        %1356 = vmatprep.mubr.bf16.mxu0 0
        %1357 = vmatmul.mubr.bf16.gmra.mrb[0].mxu0 %v1319
        %v1358 = vpop.f32.mrb[0].mxu0
        %v1359 = vadd.f32 0.0, %v1358
        %v1360 = vpop.f32.mrb[0].mxu0
        %v1361 = vpop.f32.mrb[0].mxu0
        %v1362 = vpop.f32.mrb[0].mxu0
        %1363 = vdwg.mxu0
        %1365 = vrot.lane.b32.xlu0 %v1137, 8
        %v1366 = vpop.permute.xlu0 %1365
        %1369 = vrot.lane.b32.xlu0 %v1248, 16
        %v1370 = vpop.permute.xlu0 %1369
        %1373 = vrot.lane.b32.xlu0 %v1359, 24
        %v1374 = vpop.permute.xlu0 %1373
        %v1376 = vsel %vm922, %v1026, %v1366
        %vm1377 = vcmask 130048
        %v1378 = vsel %vm1377, %v1376, %v1370
        %vm1379 = vcmask 195584
        %v1380 = vsel %vm1379, %v1378, %v1374
        %v1381 = vpack.c.bf16 %v1380, %v1380
        %v1382 = vld [vmem:[%s660] sm:$0xf]
        %v1383 = vld [vmem:[%s660 + $0x4] sm:$0xf]
        %v1384 = vld [vmem:[%s660 + $0x8] sm:$0xf]
        %v1385 = vld [vmem:[%s660 + $0xc] sm:$0xf]
        %v1386 = vld [vmem:[%s668] sm:$0x1]
        %v1388 = vlaneseq
        %v1389 = vshrl.u32 %v1388, 7
        %v1390 = vsub.s32 0, %v1389
        %v1391 = vrot.slane %v1386, %v1390
        %v1397 = vunpack.c.l.b16 %v1382
        %v1398 = vunpack.c.l.b16 %v1383
        %v1399 = vunpack.c.l.b16 %v1384
        %v1400 = vunpack.c.l.b16 %v1385
        %v1401 = vpack.c.b16 %v1398, %v1397
        %v1402 = vpack.c.b16 %v1400, %v1399
        %v1406 = vsel %vm869, %v1381, 0
        %1408 = vmatprep.subr.bf16.mxu0 0
        %1409 = vmatpush1.bf16.msra.mxu0 %v1401
        %1410 = vmatprep.subr.bf16.mxu0 0
        %1411 = vmatpush1.bf16.msra.mxu0 %v1402
        %1412 = vmatprep.subr.bf16.mxu0 0
        %1413 = vmatpush1.bf16.msra.mxu0 0
        %1414 = vmatprep.subr.bf16.mxu0 0
        %1415 = vmatpush1.bf16.msra.mxu0 0
        %1416 = vmatprep.subr.bf16.mxu0 0
        %1417 = vmatpush1.bf16.msra.mxu0 0
        %1418 = vmatprep.subr.bf16.mxu0 0
        %1419 = vmatpush1.bf16.msra.mxu0 0
        %1420 = vmatprep.subr.bf16.mxu0 0
        %1421 = vmatpush1.bf16.msra.mxu0 0
        %1422 = vmatprep.subr.bf16.mxu0 0
        %1423 = vmatpush1.bf16.msra.mxu0 0
        %1424 = vmatprep.subr.bf16.mxu0 0
        %1425 = vmatpush1.bf16.msra.mxu0 0
        %1426 = vmatprep.subr.bf16.mxu0 0
        %1427 = vmatpush1.bf16.msra.mxu0 0
        %1428 = vmatprep.subr.bf16.mxu0 0
        %1429 = vmatpush1.bf16.msra.mxu0 0
        %1430 = vmatprep.subr.bf16.mxu0 0
        %1431 = vmatpush1.bf16.msra.mxu0 0
        %1432 = vmatprep.subr.bf16.mxu0 0
        %1433 = vmatpush1.bf16.msra.mxu0 0
        %1434 = vmatprep.subr.bf16.mxu0 0
        %1435 = vmatpush1.bf16.msra.mxu0 0
        %1436 = vmatprep.subr.bf16.mxu0 0
        %1437 = vmatpush1.bf16.msra.mxu0 0
        %1438 = vmatprep.subr.bf16.mxu0 0
        %1439 = vmatpush1.bf16.msra.mxu0 0
        %1440 = vmatprep.mubr.bf16.mxu0 0
        %1441 = vmatmul.mubr.bf16.gmra.mrb[0].mxu0 %v1406
        %v1442 = vpop.f32.mrb[0].mxu0
        %v1443 = vadd.f32 %v1391, %v1442
        %v1444 = vpop.f32.mrb[0].mxu0
        %v1445 = vpop.f32.mrb[0].mxu0
        %v1446 = vpop.f32.mrb[0].mxu0
        %1447 = vdwg.mxu0
        %v1448 = vadd.f32 %v844, %v1443
        %v1449 = vld [vmem:[%s676] sm:$0x1]
        %v1450 = vld [vmem:[%s684] sm:$0x1]
        %v1451 = vsel %vm869, %v1448, 0.0
        %1452 = vadd.xlane.f32.xlu0 %v1451
        %v1453 = vpop.xlane.xlu0 %1452
        %v1454 = vrcp.pop 32.0
        %v1455 = vmul.f32 %v1453, %v1454
        %v1456 = vsub.f32 %v1448, %v1455
        %v1457 = vmul.f32 %v1456, %v1456
        %v1458 = vsel %vm869, %v1457, 0.0
        %1459 = vadd.xlane.f32.xlu0 %v1458
        %v1460 = vpop.xlane.xlu0 %1459
        %v1461 = vmul.f32 %v1460, %v1454
        %v1462 = vadd.f32 %v1461, 1e-05
        %v1463 = vrsqrt.pop %v1462
        %v1464 = vmul.f32 %v1456, %v1463
        %v1466 = vlaneseq
        %v1467 = vshrl.u32 %v1466, 7
        %v1468 = vsub.s32 0, %v1467
        %v1469 = vrot.slane %v1449, %v1468
        %v1471 = vmul.f32 %v1464, %v1469
        %v1473 = vlaneseq
        %v1474 = vshrl.u32 %v1473, 7
        %v1475 = vsub.s32 0, %v1474
        %v1476 = vrot.slane %v1450, %v1475
        %v1478 = vadd.f32 %v1471, %v1476
        %v1479 = vpack.c.bf16 %v1478, %v1478
        %v1480 = vld [vmem:[%s693] sm:$0xf]
        %v1481 = vld [vmem:[%s693 + $0x4] sm:$0xf]
        %v1482 = vld [vmem:[%s693 + $0x8] sm:$0xf]
        %v1483 = vld [vmem:[%s693 + $0xc] sm:$0xf]
        %v1484 = vld [vmem:[%s701] sm:$0x1]
        %v1486 = vlaneseq
        %v1487 = vshrl.u32 %v1486, 7
        %v1488 = vsub.s32 0, %v1487
        %v1489 = vrot.slane %v1484, %v1488
        %v1495 = vunpack.c.l.b16 %v1480
        %v1496 = vunpack.c.l.b16 %v1481
        %v1497 = vunpack.c.l.b16 %v1482
        %v1498 = vunpack.c.l.b16 %v1483
        %v1499 = vpack.c.b16 %v1496, %v1495
        %v1500 = vpack.c.b16 %v1498, %v1497
        %v1504 = vsel %vm869, %v1479, 0
        %1506 = vmatprep.subr.bf16.mxu0 0
        %1507 = vmatpush1.bf16.msra.mxu0 %v1499
        %1508 = vmatprep.subr.bf16.mxu0 0
        %1509 = vmatpush1.bf16.msra.mxu0 %v1500
        %1510 = vmatprep.subr.bf16.mxu0 0
        %1511 = vmatpush1.bf16.msra.mxu0 0
        %1512 = vmatprep.subr.bf16.mxu0 0
        %1513 = vmatpush1.bf16.msra.mxu0 0
        %1514 = vmatprep.subr.bf16.mxu0 0
        %1515 = vmatpush1.bf16.msra.mxu0 0
        %1516 = vmatprep.subr.bf16.mxu0 0
        %1517 = vmatpush1.bf16.msra.mxu0 0
        %1518 = vmatprep.subr.bf16.mxu0 0
        %1519 = vmatpush1.bf16.msra.mxu0 0
        %1520 = vmatprep.subr.bf16.mxu0 0
        %1521 = vmatpush1.bf16.msra.mxu0 0
        %1522 = vmatprep.subr.bf16.mxu0 0
        %1523 = vmatpush1.bf16.msra.mxu0 0
        %1524 = vmatprep.subr.bf16.mxu0 0
        %1525 = vmatpush1.bf16.msra.mxu0 0
        %1526 = vmatprep.subr.bf16.mxu0 0
        %1527 = vmatpush1.bf16.msra.mxu0 0
        %1528 = vmatprep.subr.bf16.mxu0 0
        %1529 = vmatpush1.bf16.msra.mxu0 0
        %1530 = vmatprep.subr.bf16.mxu0 0
        %1531 = vmatpush1.bf16.msra.mxu0 0
        %1532 = vmatprep.subr.bf16.mxu0 0
        %1533 = vmatpush1.bf16.msra.mxu0 0
        %1534 = vmatprep.subr.bf16.mxu0 0
        %1535 = vmatpush1.bf16.msra.mxu0 0
        %1536 = vmatprep.subr.bf16.mxu0 0
        %1537 = vmatpush1.bf16.msra.mxu0 0
        %1538 = vmatprep.mubr.bf16.mxu0 0
        %1539 = vmatmul.mubr.bf16.gmra.mrb[0].mxu0 %v1504
        %v1540 = vpop.f32.mrb[0].mxu0
        %v1541 = vadd.f32 %v1489, %v1540
        %v1542 = vpop.f32.mrb[0].mxu0
        %v1543 = vpop.f32.mrb[0].mxu0
        %v1544 = vpop.f32.mrb[0].mxu0
        %1545 = vdwg.mxu0
        %v1546 = vmax.f32 %v1541, 0.0
        %v1547 = vpack.c.bf16 %v1546, %v1546
        %v1548 = vld [vmem:[%s710] sm:$0xf]
        %v1549 = vld [vmem:[%s710 + $0x4] sm:$0xf]
        %v1550 = vld [vmem:[%s710 + $0x8] sm:$0xf]
        %v1551 = vld [vmem:[%s710 + $0xc] sm:$0xf]
        %v1552 = vld [vmem:[%s710 + $0x10] sm:$0xf]
        %v1553 = vld [vmem:[%s710 + $0x14] sm:$0xf]
        %v1554 = vld [vmem:[%s710 + $0x18] sm:$0xf]
        %v1555 = vld [vmem:[%s710 + $0x1c] sm:$0xf]
        %v1556 = vld [vmem:[%s718] sm:$0x1]
        %v1558 = vlaneseq
        %v1559 = vshrl.u32 %v1558, 7
        %v1560 = vsub.s32 0, %v1559
        %v1561 = vrot.slane %v1556, %v1560
        %v1571 = vunpack.c.l.b16 %v1548
        %v1572 = vunpack.c.l.b16 %v1549
        %v1573 = vunpack.c.l.b16 %v1550
        %v1574 = vunpack.c.l.b16 %v1551
        %v1575 = vunpack.c.l.b16 %v1552
        %v1576 = vunpack.c.l.b16 %v1553
        %v1577 = vunpack.c.l.b16 %v1554
        %v1578 = vunpack.c.l.b16 %v1555
        %v1579 = vpack.c.b16 %v1572, %v1571
        %v1580 = vpack.c.b16 %v1574, %v1573
        %v1581 = vpack.c.b16 %v1576, %v1575
        %v1582 = vpack.c.b16 %v1578, %v1577
        %vm1587 = vcmask 523264
        %v1589 = vsel %vm1587, %v1547, 0
        %1591 = vmatprep.subr.bf16.mxu0 0
        %1592 = vmatpush1.bf16.msra.mxu0 %v1579
        %1593 = vmatprep.subr.bf16.mxu0 0
        %1594 = vmatpush1.bf16.msra.mxu0 %v1580
        %1595 = vmatprep.subr.bf16.mxu0 0
        %1596 = vmatpush1.bf16.msra.mxu0 %v1581
        %1597 = vmatprep.subr.bf16.mxu0 0
        %1598 = vmatpush1.bf16.msra.mxu0 %v1582
        %1599 = vmatprep.subr.bf16.mxu0 0
        %1600 = vmatpush1.bf16.msra.mxu0 0
        %1601 = vmatprep.subr.bf16.mxu0 0
        %1602 = vmatpush1.bf16.msra.mxu0 0
        %1603 = vmatprep.subr.bf16.mxu0 0
        %1604 = vmatpush1.bf16.msra.mxu0 0
        %1605 = vmatprep.subr.bf16.mxu0 0
        %1606 = vmatpush1.bf16.msra.mxu0 0
        %1607 = vmatprep.subr.bf16.mxu0 0
        %1608 = vmatpush1.bf16.msra.mxu0 0
        %1609 = vmatprep.subr.bf16.mxu0 0
        %1610 = vmatpush1.bf16.msra.mxu0 0
        %1611 = vmatprep.subr.bf16.mxu0 0
        %1612 = vmatpush1.bf16.msra.mxu0 0
        %1613 = vmatprep.subr.bf16.mxu0 0
        %1614 = vmatpush1.bf16.msra.mxu0 0
        %1615 = vmatprep.subr.bf16.mxu0 0
        %1616 = vmatpush1.bf16.msra.mxu0 0
        %1617 = vmatprep.subr.bf16.mxu0 0
        %1618 = vmatpush1.bf16.msra.mxu0 0
        %1619 = vmatprep.subr.bf16.mxu0 0
        %1620 = vmatpush1.bf16.msra.mxu0 0
        %1621 = vmatprep.subr.bf16.mxu0 0
        %1622 = vmatpush1.bf16.msra.mxu0 0
        %1623 = vmatprep.mubr.bf16.mxu0 0
        %1624 = vmatmul.mubr.bf16.gmra.mrb[0].mxu0 %v1589
        %v1625 = vpop.f32.mrb[0].mxu0
        %v1626 = vadd.f32 %v1561, %v1625
        %v1627 = vpop.f32.mrb[0].mxu0
        %v1628 = vpop.f32.mrb[0].mxu0
        %v1629 = vpop.f32.mrb[0].mxu0
        %1630 = vdwg.mxu0
        %v1631 = vadd.f32 %v1478, %v1626
        %v1632 = vld [vmem:[%s726] sm:$0x1]
        %v1633 = vld [vmem:[%s734] sm:$0x1]
        %v1634 = vsel %vm869, %v1631, 0.0
        %1635 = vadd.xlane.f32.xlu0 %v1634
        %v1636 = vpop.xlane.xlu0 %1635
        %v1637 = vmul.f32 %v1636, %v1454
        %v1638 = vsub.f32 %v1631, %v1637
        %v1639 = vmul.f32 %v1638, %v1638
        %v1640 = vsel %vm869, %v1639, 0.0
        %1641 = vadd.xlane.f32.xlu0 %v1640
        %v1642 = vpop.xlane.xlu0 %1641
        %v1643 = vmul.f32 %v1642, %v1454
        %v1644 = vadd.f32 %v1643, 1e-05
        %v1645 = vrsqrt.pop %v1644
        %v1646 = vmul.f32 %v1638, %v1645
        %v1648 = vlaneseq
        %v1649 = vshrl.u32 %v1648, 7
        %v1650 = vsub.s32 0, %v1649
        %v1651 = vrot.slane %v1632, %v1650
        %v1653 = vmul.f32 %v1646, %v1651
        %v1655 = vlaneseq
        %v1656 = vshrl.u32 %v1655, 7
        %v1657 = vsub.s32 0, %v1656
        %v1658 = vrot.slane %v1633, %v1657
        %v1660 = vadd.f32 %v1653, %v1658
        %1661 = vst.msk [vmem:[%s821] sm:$0xff] %vm869, %v1660
        %s1662 = sand.u32 %s380, 1
        %s1663 = scalar_lea.sflag [#allocation4], %s1662
        %s1664 = sand.u32 %s380, 1
        %s1665 = smul.addr %s1664, 8
        %s1666 = scalar_lea.vmem [#allocation22], %s1665
        // Predicated region
        $region126: #{tpu_custom_call.1} parent=67 // pred_check
          %p1667 = pneg %p390
        $region127: #{tpu_custom_call.1} parent=67 // pred_check_branch
          %1669 = sbr.rel (%p1667) target = $region129
        $region128: #{tpu_custom_call.1} parent=67 // pred_region
          %s1671 = ssub.s32 128, 128
          %1672 = vsyncadd %s1663, %s1671
          %s1673 = smul.addr %s52, 128
          %s1674 = scalar_lea.hbm %s13, %s1673
          %s1676 = sshll.u32 %s1666, 4
          %s1677 = int_to_ptr.vmem [resolvable:$true] %s1676
          %1679 = dma.vmem_to_hbm [thread:$0]  %s1677, 128, %s1674, %s1663
        $region129: #{tpu_custom_call.1} parent=67 // pred_fallthru
          _
      $region68: #{tpu_custom_call.1} parent=5 // pred_fallthru
        _
      %p1680 = scmp.le.s32.totalorder 2, %s43
      // Predicated region
      $region130: #{tpu_custom_call.1} parent=5 // pred_check
        %p1681 = pneg %p1680
      $region131: #{tpu_custom_call.1} parent=5 // pred_check_branch
        %1683 = sbr.rel (%p1681) target = $region133
      $region132: #{tpu_custom_call.1} parent=5 // pred_region
        %s1684 = ssub.s32 %s43, 2
        // Predicated region
        $region134: #{tpu_custom_call.1} parent=132 // pred_check
          %p1685 = pneg %p396
        $region135: #{tpu_custom_call.1} parent=132 // pred_check_branch
          %1687 = sbr.rel (%p1685) target = $region137
        $region136: #{tpu_custom_call.1} parent=132 // pred_region
          %s1688 = sand.u32 %s381, 1
          %s1689 = scalar_lea.sflag [#allocation4], %s1688
          %s1690 = sand.u32 %s381, 1
          %s1691 = smul.addr %s1690, 8
          %s1692 = scalar_lea.vmem [#allocation22], %s1691
          %1693 = dma.done %s1689, 128
        $region137: #{tpu_custom_call.1} parent=132 // pred_fallthru
          _
      $region133: #{tpu_custom_call.1} parent=5 // pred_fallthru
        _
    $region6: #{tpu_custom_call.1} parent=1 // loop_footer
      %s47 = sadd.s32 1, %s43
    $region7: #{tpu_custom_call.1} parent=1 // loop_footer_branch
      %42 = sbr.rel target = $region3
    $region8: #{tpu_custom_call.1} parent=1 // loop_exit
      _
    %1694 = vsyncpa [#allocation3], 1
    %s1695 = scalar_lea.sflag [#allocation3], 1
    %1696 = vsyncpa %s1695, 1
    %1697 = vsyncpa [#allocation6], 1
    %s1698 = scalar_lea.sflag [#allocation6], 1
    %1699 = vsyncpa %s1698, 1
    %1700 = vsyncpa [#allocation9], 1
    %s1701 = scalar_lea.sflag [#allocation9], 1
    %1702 = vsyncpa %s1701, 1
    %1703 = vsyncpa [#allocation12], 1
    %s1704 = scalar_lea.sflag [#allocation12], 1
    %1705 = vsyncpa %s1704, 1
    %1706 = vsyncpa [#allocation15], 1
    %s1707 = scalar_lea.sflag [#allocation15], 1
    %1708 = vsyncpa %s1707, 1
    %1709 = vsyncpa [#allocation18], 1
    %s1710 = scalar_lea.sflag [#allocation18], 1
    %1711 = vsyncpa %s1710, 1
    %1712 = vsyncpa [#allocation21], 1
    %s1713 = scalar_lea.sflag [#allocation21], 1
    %1714 = vsyncpa %s1713, 1
    %1715 = vsyncpa [#allocation4], 1
    %s1716 = scalar_lea.sflag [#allocation4], 1
    %1717 = vsyncpa %s1716, 1

</llo_original>
